<compile_context>
chip_gen: v5e
topology: v5e:2x2
jax: 0.10.0
libtpu: 0.0.40
codegen_flags: <defaults>
</compile_context>

<pallas_src>
import functools

import jax
import jax.numpy as jnp
from jax.experimental import pallas as pl
from jax.experimental.pallas import tpu as pltpu

EPS = 1e-5  # PyTorch BatchNorm default eps


def _encoder_kernel(xcol_ref, w1_ref, s1_ref, t1_ref,
                    w2_ref, s2_ref, t2_ref, wr_ref, br_ref,
                    w3_ref, s3_ref, t3_ref,
                    mask_ref, sel_ref, wml_ref, bml_ref,
                    out_ref, *, tb, seq_len, mm_dtype):
    f32 = jnp.float32
    L = seq_len
    xc = xcol_ref[...]                                               # (TB*L, 5) im2col of raw 1-ch input

    # --- conv1: Conv1d(1, 64, k=5, pad=2) + BN + ReLU, one im2col matmul ---
    h1 = jnp.dot(xc.astype(mm_dtype), w1_ref[...],
                 preferred_element_type=f32)                         # (TB*L, 64)
    h1 = jnp.maximum(h1 * s1_ref[...] + t1_ref[...], 0.0)

    # --- conv2: Conv1d(64, 128, k=5, pad=2) + BN + ReLU, fused im2col (K=320) ---
    c1 = h1.shape[-1]
    h1_3d = h1.reshape(tb, L, c1)
    z2 = jnp.zeros((tb, 2, c1), f32)
    h1p = jnp.concatenate([z2, h1_3d, z2], axis=1)                   # (TB, L+4, 64)
    cols2 = jnp.concatenate([h1p[:, dk:dk + L, :] for dk in range(5)],
                            axis=2).reshape(tb * L, 5 * c1)          # (TB*L, 320)
    h2 = jnp.dot(cols2.astype(mm_dtype), w2_ref[...],
                 preferred_element_type=f32)                         # (TB*L, 128)
    h2 = jnp.maximum(h2 * s2_ref[...] + t2_ref[...], 0.0)

    # --- residual: Conv1d(1, 128, k=1) on raw input (centre tap), added post-ReLU ---
    hs = h2 + (xc[:, 2:3] * wr_ref[...] + br_ref[...])               # (TB*L, 128)

    # --- conv3: Conv1d(128, C, k=3, pad=1) + BN + ReLU, fused im2col (K=384).
    # Weight / BN scale / shift are pre-tiled to N = L*C lanes, so every row
    # carries L identical copies of its C outputs (free on the MXU). ---
    c2 = hs.shape[-1]
    hs_3d = hs.reshape(tb, L, c2)
    z1 = jnp.zeros((tb, 1, c2), f32)
    hsp = jnp.concatenate([z1, hs_3d, z1], axis=1)                   # (TB, L+2, 128)
    cols3 = jnp.concatenate([hsp[:, dk:dk + L, :] for dk in range(3)],
                            axis=2).reshape(tb * L, 3 * c2)          # (TB*L, 384)
    h3 = jnp.dot(cols3.astype(mm_dtype), w3_ref[...],
                 preferred_element_type=f32)                         # (TB*L, L*C)
    h3 = jnp.maximum(h3 * s3_ref[...] + t3_ref[...], 0.0)

    # --- fc_mean / fc_logvar fused: keep each row's own lane block (flatten
    # order l*C + c), one wide-K contraction with the fused FC weight, then
    # per-sample row-sum via a 0/1 selection matmul. ---
    g = (h3 * mask_ref[...]).astype(mm_dtype)                        # (TB*L, L*C)
    h = jnp.dot(g, wml_ref[...], preferred_element_type=f32)         # (TB*L, 2D)
    out = jnp.dot(sel_ref[...], h, preferred_element_type=f32)       # (TB, 2D)
    out_ref[...] = out + bml_ref[...]


def init_params(key, latent_dim, latent_channel, seq_length):
    """Deterministic synthetic parameters matching the PyTorch module's shapes."""
    ks = jax.random.split(key, 24)

    def n(i, shape, scale=0.1):
        return scale * jax.random.normal(ks[i], shape, jnp.float32)

    C, D, F = latent_channel, latent_dim, latent_channel * seq_length
    p = {}
    p["W1"] = n(0, (64, 1, 5));            p["b1"] = n(1, (64,))
    p["g1"] = 1.0 + n(2, (64,));           p["be1"] = n(3, (64,))
    p["rm1"] = n(4, (64,))
    p["rv1"] = jax.random.uniform(ks[5], (64,), jnp.float32, 0.5, 1.5)
    p["W2"] = n(6, (128, 64, 5));          p["b2"] = n(7, (128,))
    p["g2"] = 1.0 + n(8, (128,));          p["be2"] = n(9, (128,))
    p["rm2"] = n(10, (128,))
    p["rv2"] = jax.random.uniform(ks[11], (128,), jnp.float32, 0.5, 1.5)
    p["Wr"] = n(12, (128, 1, 1));          p["br"] = n(13, (128,))
    p["W3"] = n(14, (C, 128, 3));          p["b3"] = n(15, (C,))
    p["g3"] = 1.0 + n(16, (C,));           p["be3"] = n(17, (C,))
    p["rm3"] = n(18, (C,))
    p["rv3"] = jax.random.uniform(ks[19], (C,), jnp.float32, 0.5, 1.5)
    p["Wm"] = n(20, (D, F));               p["bm"] = n(21, (D,))
    p["Wl"] = n(22, (D, F));               p["bl"] = n(23, (D,))
    return p


def _pack_kernel_params(p, latent_dim, latent_channel, seq_length, batch_tile,
                        compute_dtype):
    """Permute torch-layout weights into the kernel's (rows, lanes) layout, fold
    conv bias + eval-mode BatchNorm into per-channel scale/shift, and build the
    constant position-mask / selection matrices for the fused FC."""
    L, C, D, TB = seq_length, latent_channel, latent_dim, batch_tile
    cd = compute_dtype

    def fold(g, be, rm, rv, b):
        s = g / jnp.sqrt(rv + EPS)
        t = (b - rm) * s + be
        return s[None, :], t[None, :]

    w1 = jnp.transpose(p["W1"][:, 0, :], (1, 0)).astype(cd)                  # (5, 64)  [dk, co]
    s1, t1 = fold(p["g1"], p["be1"], p["rm1"], p["rv1"], p["b1"])
    w2 = jnp.transpose(p["W2"], (2, 1, 0)).reshape(5 * 64, 128).astype(cd)   # (320, 128) [dk*64+ci, co]
    s2, t2 = fold(p["g2"], p["be2"], p["rm2"], p["rv2"], p["b2"])
    wr = p["Wr"][:, 0, 0][None, :]                                           # (1, 128)
    br = p["br"][None, :]
    w3 = jnp.transpose(p["W3"], (2, 1, 0)).reshape(3 * 128, C)               # (384, C) [dk*128+ci, c]
    s3, t3 = fold(p["g3"], p["be3"], p["rm3"], p["rv3"], p["b3"])
    w3t = jnp.tile(w3, (1, L)).astype(cd)                                    # (384, L*C)
    s3t = jnp.tile(s3, (1, L))
    t3t = jnp.tile(t3, (1, L))
    # torch flatten of (B, C, L) is index c*L + l; re-index FC weights to [l*C + c, d].
    wm = jnp.transpose(p["Wm"].reshape(D, C, L), (2, 1, 0))                  # (L, C, D)
    wl = jnp.transpose(p["Wl"].reshape(D, C, L), (2, 1, 0))                  # (L, C, D)
    wml = jnp.concatenate([wm, wl], axis=-1).reshape(L * C, 2 * D).astype(cd)
    bml = jnp.concatenate([p["bm"], p["bl"]])[None, :]                       # (1, 2D)
    # 0/1 position mask (row r keeps lane block r % L) and per-sample row-sum
    # selection matrix; constants of the shapes only.
    r = jnp.arange(TB * L, dtype=jnp.int32)
    j = jnp.arange(L * C, dtype=jnp.int32)
    mask = ((r % L)[:, None] == (j // C)[None, :]).astype(jnp.float32)       # (TB*L, L*C)
    sel = (jnp.arange(TB, dtype=jnp.int32)[:, None] == (r // L)[None, :]
           ).astype(jnp.float32)                                             # (TB, TB*L)
    return (w1, s1, t1, w2, s2, t2, wr, br, w3t, s3t, t3t, mask, sel, wml, bml)


@functools.partial(jax.jit, static_argnames=("latent_dim", "latent_channel",
                                              "seq_length", "batch_tile",
                                              "compute_dtype"))
def residual_cnn_encoder(x, params, *, latent_dim, latent_channel, seq_length,
                         batch_tile=8, compute_dtype=jnp.float32):
    """x: (B, 1, L) float32 (PyTorch NCW). Returns (mean, logvar), each (B, latent_dim)."""
    B, cin, L = x.shape
    assert cin == 1 and L == seq_length
    TB = batch_tile
    assert B % TB == 0, "batch must be a multiple of batch_tile"
    assert (TB * L) % 8 == 0, "batch_tile * seq_length must be a multiple of 8"
    D = latent_dim

    # im2col of the single-channel input for the k=5/pad=2 conv1 (cheap glue;
    # the raw input has 1 channel so the 5x expansion is negligible traffic).
    xpad = jnp.pad(x[:, 0, :], ((0, 0), (2, 2)))
    xcol = jnp.stack([xpad[:, dk:dk + L] for dk in range(5)], axis=-1)       # (B, L, 5)
    xcol = xcol.reshape(B * L, 5)

    kparams = _pack_kernel_params(params, latent_dim, latent_channel,
                                  seq_length, TB, compute_dtype)

    def const_spec(a):
        return pl.BlockSpec(a.shape, lambda i, _nd=a.ndim: (0,) * _nd)

    in_specs = [pl.BlockSpec((TB * L, 5), lambda i: (i, 0))]
    in_specs += [const_spec(a) for a in kparams]
    out_specs = pl.BlockSpec((TB, 2 * D), lambda i: (i, 0))
    out_shape = jax.ShapeDtypeStruct((B, 2 * D), jnp.float32)

    kernel = functools.partial(_encoder_kernel, tb=TB, seq_len=L,
                               mm_dtype=compute_dtype)
    out = pl.pallas_call(
        kernel,
        grid=(B // TB,),
        in_specs=in_specs,
        out_specs=out_specs,
        out_shape=out_shape,
        compiler_params=pltpu.CompilerParams(
            dimension_semantics=("parallel",)),   # batch tiles are independent
    )(xcol, *kparams)
    return out[:, :D], out[:, D:]


def reference_forward(x, p):
    """Pure-JAX reference mirroring the PyTorch forward (eval-mode BN)."""
    hi = jax.lax.Precision.HIGHEST

    def conv1d(h, w, b, pad):
        out = jax.lax.conv_general_dilated(
            h, w, window_strides=(1,), padding=[(pad, pad)],
            dimension_numbers=("NCH", "OIH", "NCH"), precision=hi)
        return out + b[None, :, None]

    def bn(h, g, be, rm, rv):
        return ((h - rm[None, :, None]) / jnp.sqrt(rv[None, :, None] + EPS)
                * g[None, :, None] + be[None, :, None])

    relu = jax.nn.relu
    h = relu(bn(conv1d(x, p["W1"], p["b1"], 2), p["g1"], p["be1"], p["rm1"], p["rv1"]))
    h = relu(bn(conv1d(h, p["W2"], p["b2"], 2), p["g2"], p["be2"], p["rm2"], p["rv2"]))
    h = h + conv1d(x, p["Wr"], p["br"], 0)
    h = relu(bn(conv1d(h, p["W3"], p["b3"], 1), p["g3"], p["be3"], p["rm3"], p["rv3"]))
    flat = h.reshape(h.shape[0], -1)                  # torch-order flatten: c*L + l
    mean = jnp.dot(flat, p["Wm"].T, precision=hi) + p["bm"]
    logvar = jnp.dot(flat, p["Wl"].T, precision=hi) + p["bl"]
    return mean, logvar


if __name__ == "__main__":
    B, latent_dim, latent_channel, seq_length = 16, 16, 8, 16
    key = jax.random.PRNGKey(0)
    kx, kp = jax.random.split(key)
    x = jax.random.normal(kx, (B, 1, seq_length), jnp.float32)
    params = init_params(kp, latent_dim, latent_channel, seq_length)

    ref_mean, ref_logvar = reference_forward(x, params)

    # f32 MXU path: tight tolerance.
    mean, logvar = residual_cnn_encoder(
        x, params, latent_dim=latent_dim, latent_channel=latent_channel,
        seq_length=seq_length, batch_tile=8, compute_dtype=jnp.float32)
    jax.block_until_ready((mean, logvar))
    assert mean.shape == (B, latent_dim) and logvar.shape == (B, latent_dim)
    assert jnp.allclose(mean, ref_mean, rtol=1e-4, atol=1e-4)
    assert jnp.allclose(logvar, ref_logvar, rtol=1e-4, atol=1e-4)

    # bf16 MXU operands (v6e/v7x recommendation), f32 accumulation: looser check.
    mean_bf, logvar_bf = residual_cnn_encoder(
        x, params, latent_dim=latent_dim, latent_channel=latent_channel,
        seq_length=seq_length, batch_tile=8, compute_dtype=jnp.bfloat16)
    jax.block_until_ready((mean_bf, logvar_bf))
    assert jnp.allclose(mean_bf, ref_mean, rtol=5e-2, atol=5e-2)
    assert jnp.allclose(logvar_bf, ref_logvar, rtol=5e-2, atol=5e-2)

    print("KERNEL_OK")
</pallas_src>

<mosaic_0001>
module attributes {stable_mosaic.version = 11 : i64} {
  func.func @_encoder_kernel(%arg0: i32, %arg1: memref<128x5xf32, #tpu.memory_space<vmem>>, %arg2: memref<5x64xf32, #tpu.memory_space<vmem>>, %arg3: memref<1x64xf32, #tpu.memory_space<vmem>>, %arg4: memref<1x64xf32, #tpu.memory_space<vmem>>, %arg5: memref<320x128xf32, #tpu.memory_space<vmem>>, %arg6: memref<1x128xf32, #tpu.memory_space<vmem>>, %arg7: memref<1x128xf32, #tpu.memory_space<vmem>>, %arg8: memref<1x128xf32, #tpu.memory_space<vmem>>, %arg9: memref<1x128xf32, #tpu.memory_space<vmem>>, %arg10: memref<384x128xf32, #tpu.memory_space<vmem>>, %arg11: memref<1x128xf32, #tpu.memory_space<vmem>>, %arg12: memref<1x128xf32, #tpu.memory_space<vmem>>, %arg13: memref<128x128xf32, #tpu.memory_space<vmem>>, %arg14: memref<8x128xf32, #tpu.memory_space<vmem>>, %arg15: memref<128x32xf32, #tpu.memory_space<vmem>>, %arg16: memref<1x32xf32, #tpu.memory_space<vmem>>, %arg17: memref<8x32xf32, #tpu.memory_space<vmem>>) attributes {dimension_semantics = [#tpu.dimension_semantics<parallel>], iteration_bounds = array<i64: 2>, scalar_prefetch = 0 : i64, scratch_operands = 0 : i64, tpu.core_type = #tpu.core_type<tc>, window_params = [{transform_indices = @transform_0, window_bounds = array<i64: 128, 5>}, {pipeline_mode = #tpu.pipeline_mode<synchronous>, transform_indices = @transform_1, window_bounds = array<i64: 5, 64>}, {pipeline_mode = #tpu.pipeline_mode<synchronous>, transform_indices = @transform_2, window_bounds = array<i64: 1, 64>}, {pipeline_mode = #tpu.pipeline_mode<synchronous>, transform_indices = @transform_3, window_bounds = array<i64: 1, 64>}, {pipeline_mode = #tpu.pipeline_mode<synchronous>, transform_indices = @transform_4, window_bounds = array<i64: 320, 128>}, {pipeline_mode = #tpu.pipeline_mode<synchronous>, transform_indices = @transform_5, window_bounds = array<i64: 1, 128>}, {pipeline_mode = #tpu.pipeline_mode<synchronous>, transform_indices = @transform_6, window_bounds = array<i64: 1, 128>}, {pipeline_mode = #tpu.pipeline_mode<synchronous>, transform_indices = @transform_7, window_bounds = array<i64: 1, 128>}, {pipeline_mode = #tpu.pipeline_mode<synchronous>, transform_indices = @transform_8, window_bounds = array<i64: 1, 128>}, {pipeline_mode = #tpu.pipeline_mode<synchronous>, transform_indices = @transform_9, window_bounds = array<i64: 384, 128>}, {pipeline_mode = #tpu.pipeline_mode<synchronous>, transform_indices = @transform_10, window_bounds = array<i64: 1, 128>}, {pipeline_mode = #tpu.pipeline_mode<synchronous>, transform_indices = @transform_11, window_bounds = array<i64: 1, 128>}, {pipeline_mode = #tpu.pipeline_mode<synchronous>, transform_indices = @transform_12, window_bounds = array<i64: 128, 128>}, {pipeline_mode = #tpu.pipeline_mode<synchronous>, transform_indices = @transform_13, window_bounds = array<i64: 8, 128>}, {pipeline_mode = #tpu.pipeline_mode<synchronous>, transform_indices = @transform_14, window_bounds = array<i64: 128, 32>}, {pipeline_mode = #tpu.pipeline_mode<synchronous>, transform_indices = @transform_15, window_bounds = array<i64: 1, 32>}, {transform_indices = @transform_16, window_bounds = array<i64: 8, 32>}]} {
    %c0 = arith.constant 0 : index
    %c0_0 = arith.constant 0 : index
    %0 = vector.load %arg1[%c0, %c0_0] : memref<128x5xf32, #tpu.memory_space<vmem>>, vector<128x5xf32>
    %c0_1 = arith.constant 0 : index
    %c0_2 = arith.constant 0 : index
    %1 = vector.load %arg2[%c0_1, %c0_2] : memref<5x64xf32, #tpu.memory_space<vmem>>, vector<5x64xf32>
    %cst = arith.constant dense<0.000000e+00> : vector<128x64xf32>
    %2 = tpu.matmul %0, %1, %cst {dimension_numbers = #tpu.dot_dimension_numbers<[1], [0], [0], [1], [0, 0, 1, 1], [], []>} : vector<128x5xf32>, vector<5x64xf32>, vector<128x64xf32> -> vector<128x64xf32>
    %c0_3 = arith.constant 0 : index
    %c0_4 = arith.constant 0 : index
    %3 = vector.load %arg3[%c0_3, %c0_4] : memref<1x64xf32, #tpu.memory_space<vmem>>, vector<1x64xf32>
    %4 = vector.broadcast %3 : vector<1x64xf32> to vector<128x64xf32>
    %5 = arith.mulf %2, %4 : vector<128x64xf32>
    %c0_5 = arith.constant 0 : index
    %c0_6 = arith.constant 0 : index
    %6 = vector.load %arg4[%c0_5, %c0_6] : memref<1x64xf32, #tpu.memory_space<vmem>>, vector<1x64xf32>
    %7 = vector.broadcast %6 : vector<1x64xf32> to vector<128x64xf32>
    %8 = arith.addf %5, %7 : vector<128x64xf32>
    %cst_7 = arith.constant 0.000000e+00 : f32
    %9 = vector.broadcast %cst_7 : f32 to vector<128x64xf32>
    %10 = arith.maximumf %8, %9 : vector<128x64xf32>
    %11 = vector.shape_cast %10 : vector<128x64xf32> to vector<8x16x64xf32>
    %cst_8 = arith.constant 0.000000e+00 : f32
    %12 = vector.broadcast %cst_8 : f32 to vector<8x2x64xf32>
    %13 = tpu.concatenate %12, %11, %12 in 1 : vector<8x2x64xf32>, vector<8x16x64xf32>, vector<8x2x64xf32> -> vector<8x20x64xf32>
    %14 = vector.extract_strided_slice %13 {offsets = [0, 0, 0], sizes = [8, 16, 64], strides = [1, 1, 1]} : vector<8x20x64xf32> to vector<8x16x64xf32>
    %15 = vector.extract_strided_slice %13 {offsets = [0, 1, 0], sizes = [8, 16, 64], strides = [1, 1, 1]} : vector<8x20x64xf32> to vector<8x16x64xf32>
    %16 = vector.extract_strided_slice %13 {offsets = [0, 2, 0], sizes = [8, 16, 64], strides = [1, 1, 1]} : vector<8x20x64xf32> to vector<8x16x64xf32>
    %17 = vector.extract_strided_slice %13 {offsets = [0, 3, 0], sizes = [8, 16, 64], strides = [1, 1, 1]} : vector<8x20x64xf32> to vector<8x16x64xf32>
    %18 = vector.extract_strided_slice %13 {offsets = [0, 4, 0], sizes = [8, 16, 64], strides = [1, 1, 1]} : vector<8x20x64xf32> to vector<8x16x64xf32>
    %19 = tpu.concatenate %14, %15, %16, %17, %18 in 2 : vector<8x16x64xf32>, vector<8x16x64xf32>, vector<8x16x64xf32>, vector<8x16x64xf32>, vector<8x16x64xf32> -> vector<8x16x320xf32>
    %20 = vector.shape_cast %19 : vector<8x16x320xf32> to vector<128x320xf32>
    %c0_9 = arith.constant 0 : index
    %c0_10 = arith.constant 0 : index
    %21 = vector.load %arg5[%c0_9, %c0_10] : memref<320x128xf32, #tpu.memory_space<vmem>>, vector<320x128xf32>
    %cst_11 = arith.constant dense<0.000000e+00> : vector<128x128xf32>
    %22 = tpu.matmul %20, %21, %cst_11 {dimension_numbers = #tpu.dot_dimension_numbers<[1], [0], [0], [1], [0, 0, 1, 1], [], []>} : vector<128x320xf32>, vector<320x128xf32>, vector<128x128xf32> -> vector<128x128xf32>
    %c0_12 = arith.constant 0 : index
    %c0_13 = arith.constant 0 : index
    %23 = vector.load %arg6[%c0_12, %c0_13] : memref<1x128xf32, #tpu.memory_space<vmem>>, vector<1x128xf32>
    %24 = vector.broadcast %23 : vector<1x128xf32> to vector<128x128xf32>
    %25 = arith.mulf %22, %24 : vector<128x128xf32>
    %c0_14 = arith.constant 0 : index
    %c0_15 = arith.constant 0 : index
    %26 = vector.load %arg7[%c0_14, %c0_15] : memref<1x128xf32, #tpu.memory_space<vmem>>, vector<1x128xf32>
    %27 = vector.broadcast %26 : vector<1x128xf32> to vector<128x128xf32>
    %28 = arith.addf %25, %27 : vector<128x128xf32>
    %cst_16 = arith.constant 0.000000e+00 : f32
    %29 = vector.broadcast %cst_16 : f32 to vector<128x128xf32>
    %30 = arith.maximumf %28, %29 : vector<128x128xf32>
    %31 = vector.extract_strided_slice %0 {offsets = [0, 2], sizes = [128, 1], strides = [1, 1]} : vector<128x5xf32> to vector<128x1xf32>
    %c0_17 = arith.constant 0 : index
    %c0_18 = arith.constant 0 : index
    %32 = vector.load %arg8[%c0_17, %c0_18] : memref<1x128xf32, #tpu.memory_space<vmem>>, vector<1x128xf32>
    %33 = vector.broadcast %31 : vector<128x1xf32> to vector<128x128xf32>
    %34 = vector.broadcast %32 : vector<1x128xf32> to vector<128x128xf32>
    %35 = arith.mulf %33, %34 : vector<128x128xf32>
    %c0_19 = arith.constant 0 : index
    %c0_20 = arith.constant 0 : index
    %36 = vector.load %arg9[%c0_19, %c0_20] : memref<1x128xf32, #tpu.memory_space<vmem>>, vector<1x128xf32>
    %37 = vector.broadcast %36 : vector<1x128xf32> to vector<128x128xf32>
    %38 = arith.addf %35, %37 : vector<128x128xf32>
    %39 = arith.addf %30, %38 : vector<128x128xf32>
    %40 = vector.shape_cast %39 : vector<128x128xf32> to vector<8x16x128xf32>
    %cst_21 = arith.constant 0.000000e+00 : f32
    %41 = vector.broadcast %cst_21 : f32 to vector<8x1x128xf32>
    %42 = tpu.concatenate %41, %40, %41 in 1 : vector<8x1x128xf32>, vector<8x16x128xf32>, vector<8x1x128xf32> -> vector<8x18x128xf32>
    %43 = vector.extract_strided_slice %42 {offsets = [0, 0, 0], sizes = [8, 16, 128], strides = [1, 1, 1]} : vector<8x18x128xf32> to vector<8x16x128xf32>
    %44 = vector.extract_strided_slice %42 {offsets = [0, 1, 0], sizes = [8, 16, 128], strides = [1, 1, 1]} : vector<8x18x128xf32> to vector<8x16x128xf32>
    %45 = vector.extract_strided_slice %42 {offsets = [0, 2, 0], sizes = [8, 16, 128], strides = [1, 1, 1]} : vector<8x18x128xf32> to vector<8x16x128xf32>
    %46 = tpu.concatenate %43, %44, %45 in 2 : vector<8x16x128xf32>, vector<8x16x128xf32>, vector<8x16x128xf32> -> vector<8x16x384xf32>
    %47 = vector.shape_cast %46 : vector<8x16x384xf32> to vector<128x384xf32>
    %c0_22 = arith.constant 0 : index
    %c0_23 = arith.constant 0 : index
    %48 = vector.load %arg10[%c0_22, %c0_23] : memref<384x128xf32, #tpu.memory_space<vmem>>, vector<384x128xf32>
    %cst_24 = arith.constant dense<0.000000e+00> : vector<128x128xf32>
    %49 = tpu.matmul %47, %48, %cst_24 {dimension_numbers = #tpu.dot_dimension_numbers<[1], [0], [0], [1], [0, 0, 1, 1], [], []>} : vector<128x384xf32>, vector<384x128xf32>, vector<128x128xf32> -> vector<128x128xf32>
    %c0_25 = arith.constant 0 : index
    %c0_26 = arith.constant 0 : index
    %50 = vector.load %arg11[%c0_25, %c0_26] : memref<1x128xf32, #tpu.memory_space<vmem>>, vector<1x128xf32>
    %51 = vector.broadcast %50 : vector<1x128xf32> to vector<128x128xf32>
    %52 = arith.mulf %49, %51 : vector<128x128xf32>
    %c0_27 = arith.constant 0 : index
    %c0_28 = arith.constant 0 : index
    %53 = vector.load %arg12[%c0_27, %c0_28] : memref<1x128xf32, #tpu.memory_space<vmem>>, vector<1x128xf32>
    %54 = vector.broadcast %53 : vector<1x128xf32> to vector<128x128xf32>
    %55 = arith.addf %52, %54 : vector<128x128xf32>
    %cst_29 = arith.constant 0.000000e+00 : f32
    %56 = vector.broadcast %cst_29 : f32 to vector<128x128xf32>
    %57 = arith.maximumf %55, %56 : vector<128x128xf32>
    %c0_30 = arith.constant 0 : index
    %c0_31 = arith.constant 0 : index
    %58 = vector.load %arg13[%c0_30, %c0_31] : memref<128x128xf32, #tpu.memory_space<vmem>>, vector<128x128xf32>
    %59 = arith.mulf %57, %58 : vector<128x128xf32>
    %c0_32 = arith.constant 0 : index
    %c0_33 = arith.constant 0 : index
    %60 = vector.load %arg15[%c0_32, %c0_33] : memref<128x32xf32, #tpu.memory_space<vmem>>, vector<128x32xf32>
    %cst_34 = arith.constant dense<0.000000e+00> : vector<128x32xf32>
    %61 = tpu.matmul %59, %60, %cst_34 {dimension_numbers = #tpu.dot_dimension_numbers<[1], [0], [0], [1], [0, 0, 1, 1], [], []>} : vector<128x128xf32>, vector<128x32xf32>, vector<128x32xf32> -> vector<128x32xf32>
    %c0_35 = arith.constant 0 : index
    %c0_36 = arith.constant 0 : index
    %62 = vector.load %arg14[%c0_35, %c0_36] : memref<8x128xf32, #tpu.memory_space<vmem>>, vector<8x128xf32>
    %cst_37 = arith.constant dense<0.000000e+00> : vector<8x32xf32>
    %63 = tpu.matmul %62, %61, %cst_37 {dimension_numbers = #tpu.dot_dimension_numbers<[1], [0], [0], [1], [0, 0, 1, 1], [], []>} : vector<8x128xf32>, vector<128x32xf32>, vector<8x32xf32> -> vector<8x32xf32>
    %c0_38 = arith.constant 0 : index
    %c0_39 = arith.constant 0 : index
    %64 = vector.load %arg16[%c0_38, %c0_39] : memref<1x32xf32, #tpu.memory_space<vmem>>, vector<1x32xf32>
    %65 = vector.broadcast %64 : vector<1x32xf32> to vector<8x32xf32>
    %66 = arith.addf %63, %65 : vector<8x32xf32>
    %c0_40 = arith.constant 0 : index
    %c0_41 = arith.constant 0 : index
    %67 = vector.load %arg17[%c0_40, %c0_41] : memref<8x32xf32, #tpu.memory_space<vmem>>, vector<8x32xf32>
    tpu.vector_store %arg17[%c0_40, %c0_41], %66 {strides = array<i32>} : memref<8x32xf32, #tpu.memory_space<vmem>>, vector<8x32xf32>,
    return
  }
  func.func @transform_0(%arg0: i32) -> (i32, i32) {
    %c0_i32 = arith.constant 0 : i32
    %c0_i32_0 = arith.constant 0 : i32
    return %arg0, %c0_i32 : i32, i32
  }
  func.func @transform_1(%arg0: i32) -> (i32, i32) {
    %c0_i32 = arith.constant 0 : i32
    %c0_i32_0 = arith.constant 0 : i32
    %c0_i32_1 = arith.constant 0 : i32
    return %c0_i32, %c0_i32_0 : i32, i32
  }
  func.func @transform_2(%arg0: i32) -> (i32, i32) {
    %c0_i32 = arith.constant 0 : i32
    %c0_i32_0 = arith.constant 0 : i32
    %c0_i32_1 = arith.constant 0 : i32
    return %c0_i32, %c0_i32_0 : i32, i32
  }
  func.func @transform_3(%arg0: i32) -> (i32, i32) {
    %c0_i32 = arith.constant 0 : i32
    %c0_i32_0 = arith.constant 0 : i32
    %c0_i32_1 = arith.constant 0 : i32
    return %c0_i32, %c0_i32_0 : i32, i32
  }
  func.func @transform_4(%arg0: i32) -> (i32, i32) {
    %c0_i32 = arith.constant 0 : i32
    %c0_i32_0 = arith.constant 0 : i32
    %c0_i32_1 = arith.constant 0 : i32
    return %c0_i32, %c0_i32_0 : i32, i32
  }
  func.func @transform_5(%arg0: i32) -> (i32, i32) {
    %c0_i32 = arith.constant 0 : i32
    %c0_i32_0 = arith.constant 0 : i32
    %c0_i32_1 = arith.constant 0 : i32
    return %c0_i32, %c0_i32_0 : i32, i32
  }
  func.func @transform_6(%arg0: i32) -> (i32, i32) {
    %c0_i32 = arith.constant 0 : i32
    %c0_i32_0 = arith.constant 0 : i32
    %c0_i32_1 = arith.constant 0 : i32
    return %c0_i32, %c0_i32_0 : i32, i32
  }
  func.func @transform_7(%arg0: i32) -> (i32, i32) {
    %c0_i32 = arith.constant 0 : i32
    %c0_i32_0 = arith.constant 0 : i32
    %c0_i32_1 = arith.constant 0 : i32
    return %c0_i32, %c0_i32_0 : i32, i32
  }
  func.func @transform_8(%arg0: i32) -> (i32, i32) {
    %c0_i32 = arith.constant 0 : i32
    %c0_i32_0 = arith.constant 0 : i32
    %c0_i32_1 = arith.constant 0 : i32
    return %c0_i32, %c0_i32_0 : i32, i32
  }
  func.func @transform_9(%arg0: i32) -> (i32, i32) {
    %c0_i32 = arith.constant 0 : i32
    %c0_i32_0 = arith.constant 0 : i32
    %c0_i32_1 = arith.constant 0 : i32
    return %c0_i32, %c0_i32_0 : i32, i32
  }
  func.func @transform_10(%arg0: i32) -> (i32, i32) {
    %c0_i32 = arith.constant 0 : i32
    %c0_i32_0 = arith.constant 0 : i32
    %c0_i32_1 = arith.constant 0 : i32
    return %c0_i32, %c0_i32_0 : i32, i32
  }
  func.func @transform_11(%arg0: i32) -> (i32, i32) {
    %c0_i32 = arith.constant 0 : i32
    %c0_i32_0 = arith.constant 0 : i32
    %c0_i32_1 = arith.constant 0 : i32
    return %c0_i32, %c0_i32_0 : i32, i32
  }
  func.func @transform_12(%arg0: i32) -> (i32, i32) {
    %c0_i32 = arith.constant 0 : i32
    %c0_i32_0 = arith.constant 0 : i32
    %c0_i32_1 = arith.constant 0 : i32
    return %c0_i32, %c0_i32_0 : i32, i32
  }
  func.func @transform_13(%arg0: i32) -> (i32, i32) {
    %c0_i32 = arith.constant 0 : i32
    %c0_i32_0 = arith.constant 0 : i32
    %c0_i32_1 = arith.constant 0 : i32
    return %c0_i32, %c0_i32_0 : i32, i32
  }
  func.func @transform_14(%arg0: i32) -> (i32, i32) {
    %c0_i32 = arith.constant 0 : i32
    %c0_i32_0 = arith.constant 0 : i32
    %c0_i32_1 = arith.constant 0 : i32
    return %c0_i32, %c0_i32_0 : i32, i32
  }
  func.func @transform_15(%arg0: i32) -> (i32, i32) {
    %c0_i32 = arith.constant 0 : i32
    %c0_i32_0 = arith.constant 0 : i32
    %c0_i32_1 = arith.constant 0 : i32
    return %c0_i32, %c0_i32_0 : i32, i32
  }
  func.func @transform_16(%arg0: i32) -> (i32, i32) {
    %c0_i32 = arith.constant 0 : i32
    %c0_i32_0 = arith.constant 0 : i32
    return %arg0, %c0_i32 : i32, i32
  }
}

</mosaic_0001>

<llo_original>
// kernel: residual_cnn_encoder.1
$region0: #{residual_cnn_encoder.1}
  #allocation0 [shape = 'u32[]', space=smem, size = 0x4, offset = 0x4, fixed_abs, tag = 'smem constant byte address 0x4 - core index']
  #allocation1 [shape = 'u32[72,128]{1,0:T(1,128)}', space=vmem, size = 0x9000, scoped, tag = 'internal scratch']
  %s0 = inlined_call_operand.vmem [shape: f32[256,5], index: 0, kind: input, shape index: {}]
  %s1 = inlined_call_operand.vmem [shape: f32[5,64], index: 1, kind: input, shape index: {}]
  %s2 = inlined_call_operand.vmem [shape: f32[1,64], index: 2, kind: input, shape index: {}]
  %s3 = inlined_call_operand.vmem [shape: f32[1,64], index: 3, kind: input, shape index: {}]
  %s4 = inlined_call_operand.vmem [shape: f32[320,128], index: 4, kind: input, shape index: {}]
  %s5 = inlined_call_operand.vmem [shape: f32[1,128], index: 5, kind: input, shape index: {}]
  %s6 = inlined_call_operand.vmem [shape: f32[1,128], index: 6, kind: input, shape index: {}]
  %s7 = inlined_call_operand.vmem [shape: f32[1,128], index: 7, kind: input, shape index: {}]
  %s8 = inlined_call_operand.vmem [shape: f32[1,128], index: 8, kind: input, shape index: {}]
  %s9 = inlined_call_operand.vmem [shape: f32[384,128], index: 9, kind: input, shape index: {}]
  %s10 = inlined_call_operand.vmem [shape: f32[1,128], index: 10, kind: input, shape index: {}]
  %s11 = inlined_call_operand.vmem [shape: f32[1,128], index: 11, kind: input, shape index: {}]
  %s12 = inlined_call_operand.vmem [shape: f32[128,128], index: 12, kind: input, shape index: {}]
  %s13 = inlined_call_operand.vmem [shape: f32[8,128], index: 13, kind: input, shape index: {}]
  %s14 = inlined_call_operand.vmem [shape: f32[128,32], index: 14, kind: input, shape index: {}]
  %s15 = inlined_call_operand.vmem [shape: f32[1,32], index: 15, kind: input, shape index: {}]
  %s16 = inlined_call_operand.vmem [shape: f32[16,32], index: 16, kind: output, shape index: {}]
  %s17 = sld [smem:[#allocation0]]
  $region97: #{residual_cnn_encoder.1} parent=0
    _
  %s19 = ssub.s32 1, %s17
  %s20 = scalar_select 0, %s19, %s17
  loop: start=0, step=1, limit=4
  $region2: #{residual_cnn_encoder.1} parent=0 // loop_pre_header
    _
  $region3: #{residual_cnn_encoder.1} parent=0 // loop_header
    %s22 = sphi 0, %s26
    %p23 = scmp.ge.s32.totalorder %s22, 4
    %s32 = sphi 0, %s34
    %s35 = sphi 0, %s32
    %s36 = sphi 0, %s35
    %s52 = sphi 0, %s36
    %s56 = sphi 0, %s56
    %s58 = sphi 0, %s56
    %s59 = sphi 0, %s58
    %s73 = sphi 0, %s59
    %s77 = sphi 0, %s77
    %s79 = sphi 0, %s77
    %s80 = sphi 0, %s79
    %s94 = sphi 0, %s80
    %s98 = sphi 0, %s98
    %s100 = sphi 0, %s98
    %s101 = sphi 0, %s100
    %s115 = sphi 0, %s101
    %s119 = sphi 0, %s119
    %s121 = sphi 0, %s119
    %s122 = sphi 0, %s121
    %s136 = sphi 0, %s122
    %s140 = sphi 0, %s140
    %s142 = sphi 0, %s140
    %s143 = sphi 0, %s142
    %s157 = sphi 0, %s143
    %s161 = sphi 0, %s161
    %s163 = sphi 0, %s161
    %s164 = sphi 0, %s163
    %s178 = sphi 0, %s164
    %s182 = sphi 0, %s182
    %s184 = sphi 0, %s182
    %s185 = sphi 0, %s184
    %s199 = sphi 0, %s185
    %s203 = sphi 0, %s203
    %s205 = sphi 0, %s203
    %s206 = sphi 0, %s205
    %s220 = sphi 0, %s206
    %s224 = sphi 0, %s224
    %s226 = sphi 0, %s224
    %s227 = sphi 0, %s226
    %s241 = sphi 0, %s227
    %s245 = sphi 0, %s245
    %s247 = sphi 0, %s245
    %s248 = sphi 0, %s247
    %s262 = sphi 0, %s248
    %s266 = sphi 0, %s266
    %s268 = sphi 0, %s266
    %s269 = sphi 0, %s268
    %s283 = sphi 0, %s269
    %s287 = sphi 0, %s287
    %s289 = sphi 0, %s287
    %s290 = sphi 0, %s289
    %s304 = sphi 0, %s290
    %s308 = sphi 0, %s308
    %s310 = sphi 0, %s308
    %s311 = sphi 0, %s310
    %s325 = sphi 0, %s311
    %s329 = sphi 0, %s329
    %s331 = sphi 0, %s329
    %s332 = sphi 0, %s331
    %s346 = sphi 0, %s332
    %s350 = sphi 0, %s350
    %s352 = sphi 0, %s350
    %s353 = sphi 0, %s352
    %s367 = sphi 0, %s353
    %s373 = sphi 0, %s375
    %s376 = sphi 0, %s373
    %s377 = sphi 0, %s376
    %s393 = sphi 0, %s377
  $region4: #{residual_cnn_encoder.1} parent=0 // loop_header_branch
    %25 = sbr.rel (%p23) target = $region8
  $region5: #{residual_cnn_encoder.1} parent=0 // loop_body
    %s27 = ssub.s32 %s22, 1
    %s28 = ssub.s32 %s22, 2
    %s29 = sadd.s32 %s22, 1
    %s30 = ssub.s32 %s22, %s29
    %p31 = scmp.eq.s32.totalorder %s30, 0
    %s33 = sadd.s32 %s32, 1
    %s34 = scalar_select %p31, %s32, %s33
    %p37 = pneg %p31
    %p38 = scmp.eq.s32.totalorder %s22, 1
    %p39 = por %p37, %p38
    %p40 = scmp.ne.s32.totalorder %s32, %s35
    %p41 = scmp.eq.s32.totalorder %s22, 0
    %p42 = por %p40, %p41
    %p43 = scmp.ne.s32.totalorder %s32, %s35
    %p44 = scmp.eq.s32.totalorder %s27, 1
    %p45 = por %p43, %p44
    %p46 = scmp.ne.s32.totalorder %s35, %s36
    %p47 = scmp.eq.s32.totalorder %s27, 0
    %p48 = por %p46, %p47
    %p49 = scmp.ne.s32.totalorder %s35, %s36
    %p50 = scmp.eq.s32.totalorder %s28, 1
    %p51 = por %p49, %p50
    %p53 = scmp.ne.s32.totalorder %s36, %s52
    %p54 = scmp.eq.s32.totalorder %s28, 0
    %p55 = por %p53, %p54
    %s57 = sadd.s32 %s56, 1
    %p60 = scmp.eq.s32.totalorder %s22, 1
    %p61 = scmp.ne.s32.totalorder %s56, %s58
    %p62 = scmp.eq.s32.totalorder %s22, 0
    %p63 = por %p61, %p62
    %p64 = scmp.ne.s32.totalorder %s56, %s58
    %p65 = scmp.eq.s32.totalorder %s27, 1
    %p66 = por %p64, %p65
    %p67 = scmp.ne.s32.totalorder %s58, %s59
    %p68 = scmp.eq.s32.totalorder %s27, 0
    %p69 = por %p67, %p68
    %p70 = scmp.ne.s32.totalorder %s58, %s59
    %p71 = scmp.eq.s32.totalorder %s28, 1
    %p72 = por %p70, %p71
    %p74 = scmp.ne.s32.totalorder %s59, %s73
    %p75 = scmp.eq.s32.totalorder %s28, 0
    %p76 = por %p74, %p75
    %s78 = sadd.s32 %s77, 1
    %p81 = scmp.eq.s32.totalorder %s22, 1
    %p82 = scmp.ne.s32.totalorder %s77, %s79
    %p83 = scmp.eq.s32.totalorder %s22, 0
    %p84 = por %p82, %p83
    %p85 = scmp.ne.s32.totalorder %s77, %s79
    %p86 = scmp.eq.s32.totalorder %s27, 1
    %p87 = por %p85, %p86
    %p88 = scmp.ne.s32.totalorder %s79, %s80
    %p89 = scmp.eq.s32.totalorder %s27, 0
    %p90 = por %p88, %p89
    %p91 = scmp.ne.s32.totalorder %s79, %s80
    %p92 = scmp.eq.s32.totalorder %s28, 1
    %p93 = por %p91, %p92
    %p95 = scmp.ne.s32.totalorder %s80, %s94
    %p96 = scmp.eq.s32.totalorder %s28, 0
    %p97 = por %p95, %p96
    %s99 = sadd.s32 %s98, 1
    %p102 = scmp.eq.s32.totalorder %s22, 1
    %p103 = scmp.ne.s32.totalorder %s98, %s100
    %p104 = scmp.eq.s32.totalorder %s22, 0
    %p105 = por %p103, %p104
    %p106 = scmp.ne.s32.totalorder %s98, %s100
    %p107 = scmp.eq.s32.totalorder %s27, 1
    %p108 = por %p106, %p107
    %p109 = scmp.ne.s32.totalorder %s100, %s101
    %p110 = scmp.eq.s32.totalorder %s27, 0
    %p111 = por %p109, %p110
    %p112 = scmp.ne.s32.totalorder %s100, %s101
    %p113 = scmp.eq.s32.totalorder %s28, 1
    %p114 = por %p112, %p113
    %p116 = scmp.ne.s32.totalorder %s101, %s115
    %p117 = scmp.eq.s32.totalorder %s28, 0
    %p118 = por %p116, %p117
    %s120 = sadd.s32 %s119, 1
    %p123 = scmp.eq.s32.totalorder %s22, 1
    %p124 = scmp.ne.s32.totalorder %s119, %s121
    %p125 = scmp.eq.s32.totalorder %s22, 0
    %p126 = por %p124, %p125
    %p127 = scmp.ne.s32.totalorder %s119, %s121
    %p128 = scmp.eq.s32.totalorder %s27, 1
    %p129 = por %p127, %p128
    %p130 = scmp.ne.s32.totalorder %s121, %s122
    %p131 = scmp.eq.s32.totalorder %s27, 0
    %p132 = por %p130, %p131
    %p133 = scmp.ne.s32.totalorder %s121, %s122
    %p134 = scmp.eq.s32.totalorder %s28, 1
    %p135 = por %p133, %p134
    %p137 = scmp.ne.s32.totalorder %s122, %s136
    %p138 = scmp.eq.s32.totalorder %s28, 0
    %p139 = por %p137, %p138
    %s141 = sadd.s32 %s140, 1
    %p144 = scmp.eq.s32.totalorder %s22, 1
    %p145 = scmp.ne.s32.totalorder %s140, %s142
    %p146 = scmp.eq.s32.totalorder %s22, 0
    %p147 = por %p145, %p146
    %p148 = scmp.ne.s32.totalorder %s140, %s142
    %p149 = scmp.eq.s32.totalorder %s27, 1
    %p150 = por %p148, %p149
    %p151 = scmp.ne.s32.totalorder %s142, %s143
    %p152 = scmp.eq.s32.totalorder %s27, 0
    %p153 = por %p151, %p152
    %p154 = scmp.ne.s32.totalorder %s142, %s143
    %p155 = scmp.eq.s32.totalorder %s28, 1
    %p156 = por %p154, %p155
    %p158 = scmp.ne.s32.totalorder %s143, %s157
    %p159 = scmp.eq.s32.totalorder %s28, 0
    %p160 = por %p158, %p159
    %s162 = sadd.s32 %s161, 1
    %p165 = scmp.eq.s32.totalorder %s22, 1
    %p166 = scmp.ne.s32.totalorder %s161, %s163
    %p167 = scmp.eq.s32.totalorder %s22, 0
    %p168 = por %p166, %p167
    %p169 = scmp.ne.s32.totalorder %s161, %s163
    %p170 = scmp.eq.s32.totalorder %s27, 1
    %p171 = por %p169, %p170
    %p172 = scmp.ne.s32.totalorder %s163, %s164
    %p173 = scmp.eq.s32.totalorder %s27, 0
    %p174 = por %p172, %p173
    %p175 = scmp.ne.s32.totalorder %s163, %s164
    %p176 = scmp.eq.s32.totalorder %s28, 1
    %p177 = por %p175, %p176
    %p179 = scmp.ne.s32.totalorder %s164, %s178
    %p180 = scmp.eq.s32.totalorder %s28, 0
    %p181 = por %p179, %p180
    %s183 = sadd.s32 %s182, 1
    %p186 = scmp.eq.s32.totalorder %s22, 1
    %p187 = scmp.ne.s32.totalorder %s182, %s184
    %p188 = scmp.eq.s32.totalorder %s22, 0
    %p189 = por %p187, %p188
    %p190 = scmp.ne.s32.totalorder %s182, %s184
    %p191 = scmp.eq.s32.totalorder %s27, 1
    %p192 = por %p190, %p191
    %p193 = scmp.ne.s32.totalorder %s184, %s185
    %p194 = scmp.eq.s32.totalorder %s27, 0
    %p195 = por %p193, %p194
    %p196 = scmp.ne.s32.totalorder %s184, %s185
    %p197 = scmp.eq.s32.totalorder %s28, 1
    %p198 = por %p196, %p197
    %p200 = scmp.ne.s32.totalorder %s185, %s199
    %p201 = scmp.eq.s32.totalorder %s28, 0
    %p202 = por %p200, %p201
    %s204 = sadd.s32 %s203, 1
    %p207 = scmp.eq.s32.totalorder %s22, 1
    %p208 = scmp.ne.s32.totalorder %s203, %s205
    %p209 = scmp.eq.s32.totalorder %s22, 0
    %p210 = por %p208, %p209
    %p211 = scmp.ne.s32.totalorder %s203, %s205
    %p212 = scmp.eq.s32.totalorder %s27, 1
    %p213 = por %p211, %p212
    %p214 = scmp.ne.s32.totalorder %s205, %s206
    %p215 = scmp.eq.s32.totalorder %s27, 0
    %p216 = por %p214, %p215
    %p217 = scmp.ne.s32.totalorder %s205, %s206
    %p218 = scmp.eq.s32.totalorder %s28, 1
    %p219 = por %p217, %p218
    %p221 = scmp.ne.s32.totalorder %s206, %s220
    %p222 = scmp.eq.s32.totalorder %s28, 0
    %p223 = por %p221, %p222
    %s225 = sadd.s32 %s224, 1
    %p228 = scmp.eq.s32.totalorder %s22, 1
    %p229 = scmp.ne.s32.totalorder %s224, %s226
    %p230 = scmp.eq.s32.totalorder %s22, 0
    %p231 = por %p229, %p230
    %p232 = scmp.ne.s32.totalorder %s224, %s226
    %p233 = scmp.eq.s32.totalorder %s27, 1
    %p234 = por %p232, %p233
    %p235 = scmp.ne.s32.totalorder %s226, %s227
    %p236 = scmp.eq.s32.totalorder %s27, 0
    %p237 = por %p235, %p236
    %p238 = scmp.ne.s32.totalorder %s226, %s227
    %p239 = scmp.eq.s32.totalorder %s28, 1
    %p240 = por %p238, %p239
    %p242 = scmp.ne.s32.totalorder %s227, %s241
    %p243 = scmp.eq.s32.totalorder %s28, 0
    %p244 = por %p242, %p243
    %s246 = sadd.s32 %s245, 1
    %p249 = scmp.eq.s32.totalorder %s22, 1
    %p250 = scmp.ne.s32.totalorder %s245, %s247
    %p251 = scmp.eq.s32.totalorder %s22, 0
    %p252 = por %p250, %p251
    %p253 = scmp.ne.s32.totalorder %s245, %s247
    %p254 = scmp.eq.s32.totalorder %s27, 1
    %p255 = por %p253, %p254
    %p256 = scmp.ne.s32.totalorder %s247, %s248
    %p257 = scmp.eq.s32.totalorder %s27, 0
    %p258 = por %p256, %p257
    %p259 = scmp.ne.s32.totalorder %s247, %s248
    %p260 = scmp.eq.s32.totalorder %s28, 1
    %p261 = por %p259, %p260
    %p263 = scmp.ne.s32.totalorder %s248, %s262
    %p264 = scmp.eq.s32.totalorder %s28, 0
    %p265 = por %p263, %p264
    %s267 = sadd.s32 %s266, 1
    %p270 = scmp.eq.s32.totalorder %s22, 1
    %p271 = scmp.ne.s32.totalorder %s266, %s268
    %p272 = scmp.eq.s32.totalorder %s22, 0
    %p273 = por %p271, %p272
    %p274 = scmp.ne.s32.totalorder %s266, %s268
    %p275 = scmp.eq.s32.totalorder %s27, 1
    %p276 = por %p274, %p275
    %p277 = scmp.ne.s32.totalorder %s268, %s269
    %p278 = scmp.eq.s32.totalorder %s27, 0
    %p279 = por %p277, %p278
    %p280 = scmp.ne.s32.totalorder %s268, %s269
    %p281 = scmp.eq.s32.totalorder %s28, 1
    %p282 = por %p280, %p281
    %p284 = scmp.ne.s32.totalorder %s269, %s283
    %p285 = scmp.eq.s32.totalorder %s28, 0
    %p286 = por %p284, %p285
    %s288 = sadd.s32 %s287, 1
    %p291 = scmp.eq.s32.totalorder %s22, 1
    %p292 = scmp.ne.s32.totalorder %s287, %s289
    %p293 = scmp.eq.s32.totalorder %s22, 0
    %p294 = por %p292, %p293
    %p295 = scmp.ne.s32.totalorder %s287, %s289
    %p296 = scmp.eq.s32.totalorder %s27, 1
    %p297 = por %p295, %p296
    %p298 = scmp.ne.s32.totalorder %s289, %s290
    %p299 = scmp.eq.s32.totalorder %s27, 0
    %p300 = por %p298, %p299
    %p301 = scmp.ne.s32.totalorder %s289, %s290
    %p302 = scmp.eq.s32.totalorder %s28, 1
    %p303 = por %p301, %p302
    %p305 = scmp.ne.s32.totalorder %s290, %s304
    %p306 = scmp.eq.s32.totalorder %s28, 0
    %p307 = por %p305, %p306
    %s309 = sadd.s32 %s308, 1
    %p312 = scmp.eq.s32.totalorder %s22, 1
    %p313 = scmp.ne.s32.totalorder %s308, %s310
    %p314 = scmp.eq.s32.totalorder %s22, 0
    %p315 = por %p313, %p314
    %p316 = scmp.ne.s32.totalorder %s308, %s310
    %p317 = scmp.eq.s32.totalorder %s27, 1
    %p318 = por %p316, %p317
    %p319 = scmp.ne.s32.totalorder %s310, %s311
    %p320 = scmp.eq.s32.totalorder %s27, 0
    %p321 = por %p319, %p320
    %p322 = scmp.ne.s32.totalorder %s310, %s311
    %p323 = scmp.eq.s32.totalorder %s28, 1
    %p324 = por %p322, %p323
    %p326 = scmp.ne.s32.totalorder %s311, %s325
    %p327 = scmp.eq.s32.totalorder %s28, 0
    %p328 = por %p326, %p327
    %s330 = sadd.s32 %s329, 1
    %p333 = scmp.eq.s32.totalorder %s22, 1
    %p334 = scmp.ne.s32.totalorder %s329, %s331
    %p335 = scmp.eq.s32.totalorder %s22, 0
    %p336 = por %p334, %p335
    %p337 = scmp.ne.s32.totalorder %s329, %s331
    %p338 = scmp.eq.s32.totalorder %s27, 1
    %p339 = por %p337, %p338
    %p340 = scmp.ne.s32.totalorder %s331, %s332
    %p341 = scmp.eq.s32.totalorder %s27, 0
    %p342 = por %p340, %p341
    %p343 = scmp.ne.s32.totalorder %s331, %s332
    %p344 = scmp.eq.s32.totalorder %s28, 1
    %p345 = por %p343, %p344
    %p347 = scmp.ne.s32.totalorder %s332, %s346
    %p348 = scmp.eq.s32.totalorder %s28, 0
    %p349 = por %p347, %p348
    %s351 = sadd.s32 %s350, 1
    %p354 = scmp.eq.s32.totalorder %s22, 1
    %p355 = scmp.ne.s32.totalorder %s350, %s352
    %p356 = scmp.eq.s32.totalorder %s22, 0
    %p357 = por %p355, %p356
    %p358 = scmp.ne.s32.totalorder %s350, %s352
    %p359 = scmp.eq.s32.totalorder %s27, 1
    %p360 = por %p358, %p359
    %p361 = scmp.ne.s32.totalorder %s352, %s353
    %p362 = scmp.eq.s32.totalorder %s27, 0
    %p363 = por %p361, %p362
    %p364 = scmp.ne.s32.totalorder %s352, %s353
    %p365 = scmp.eq.s32.totalorder %s28, 1
    %p366 = por %p364, %p365
    %p368 = scmp.ne.s32.totalorder %s353, %s367
    %p369 = scmp.eq.s32.totalorder %s28, 0
    %p370 = por %p368, %p369
    %s371 = ssub.s32 %s22, %s29
    %p372 = scmp.eq.s32.totalorder %s371, 0
    %s374 = sadd.s32 %s373, 1
    %s375 = scalar_select %p372, %s373, %s374
    %p378 = pneg %p372
    %p379 = scmp.eq.s32.totalorder %s22, 1
    %p380 = por %p378, %p379
    %p381 = scmp.ne.s32.totalorder %s373, %s376
    %p382 = scmp.eq.s32.totalorder %s22, 0
    %p383 = por %p381, %p382
    %p384 = scmp.ne.s32.totalorder %s373, %s376
    %p385 = scmp.eq.s32.totalorder %s27, 1
    %p386 = por %p384, %p385
    %p387 = scmp.ne.s32.totalorder %s376, %s377
    %p388 = scmp.eq.s32.totalorder %s27, 0
    %p389 = por %p387, %p388
    %p390 = scmp.ne.s32.totalorder %s376, %s377
    %p391 = scmp.eq.s32.totalorder %s28, 1
    %p392 = por %p390, %p391
    %p394 = scmp.ne.s32.totalorder %s377, %s393
    %p395 = scmp.eq.s32.totalorder %s28, 0
    %p396 = por %p394, %p395
    %p397 = scmp.le.s32.totalorder 1, %s22
    %p398 = scmp.lt.s32.totalorder %s22, 3
    %p399 = pnand %p397, %p398
    %p400 = pneg %p399
    // Predicated region
    $region9: #{residual_cnn_encoder.1} parent=5 // pred_check
      _
    $region10: #{residual_cnn_encoder.1} parent=5 // pred_check_branch
      %402 = sbr.rel (%p399) target = $region12
    $region11: #{residual_cnn_encoder.1} parent=5 // pred_region
      %s403 = ssub.s32 %s22, 1
      // Predicated region
      $region13: #{residual_cnn_encoder.1} parent=11 // pred_check
        %p404 = pneg %p69
      $region14: #{residual_cnn_encoder.1} parent=11 // pred_check_branch
        %406 = sbr.rel (%p404) target = $region16
      $region15: #{residual_cnn_encoder.1} parent=11 // pred_region
        _
      $region16: #{residual_cnn_encoder.1} parent=11 // pred_fallthru
        _
      // Predicated region
      $region17: #{residual_cnn_encoder.1} parent=11 // pred_check
        %p407 = pneg %p90
      $region18: #{residual_cnn_encoder.1} parent=11 // pred_check_branch
        %409 = sbr.rel (%p407) target = $region20
      $region19: #{residual_cnn_encoder.1} parent=11 // pred_region
        _
      $region20: #{residual_cnn_encoder.1} parent=11 // pred_fallthru
        _
      // Predicated region
      $region21: #{residual_cnn_encoder.1} parent=11 // pred_check
        %p410 = pneg %p111
      $region22: #{residual_cnn_encoder.1} parent=11 // pred_check_branch
        %412 = sbr.rel (%p410) target = $region24
      $region23: #{residual_cnn_encoder.1} parent=11 // pred_region
        _
      $region24: #{residual_cnn_encoder.1} parent=11 // pred_fallthru
        _
      // Predicated region
      $region25: #{residual_cnn_encoder.1} parent=11 // pred_check
        %p413 = pneg %p132
      $region26: #{residual_cnn_encoder.1} parent=11 // pred_check_branch
        %415 = sbr.rel (%p413) target = $region28
      $region27: #{residual_cnn_encoder.1} parent=11 // pred_region
        _
      $region28: #{residual_cnn_encoder.1} parent=11 // pred_fallthru
        _
      // Predicated region
      $region29: #{residual_cnn_encoder.1} parent=11 // pred_check
        %p416 = pneg %p153
      $region30: #{residual_cnn_encoder.1} parent=11 // pred_check_branch
        %418 = sbr.rel (%p416) target = $region32
      $region31: #{residual_cnn_encoder.1} parent=11 // pred_region
        _
      $region32: #{residual_cnn_encoder.1} parent=11 // pred_fallthru
        _
      // Predicated region
      $region33: #{residual_cnn_encoder.1} parent=11 // pred_check
        %p419 = pneg %p174
      $region34: #{residual_cnn_encoder.1} parent=11 // pred_check_branch
        %421 = sbr.rel (%p419) target = $region36
      $region35: #{residual_cnn_encoder.1} parent=11 // pred_region
        _
      $region36: #{residual_cnn_encoder.1} parent=11 // pred_fallthru
        _
      // Predicated region
      $region37: #{residual_cnn_encoder.1} parent=11 // pred_check
        %p422 = pneg %p195
      $region38: #{residual_cnn_encoder.1} parent=11 // pred_check_branch
        %424 = sbr.rel (%p422) target = $region40
      $region39: #{residual_cnn_encoder.1} parent=11 // pred_region
        _
      $region40: #{residual_cnn_encoder.1} parent=11 // pred_fallthru
        _
      // Predicated region
      $region41: #{residual_cnn_encoder.1} parent=11 // pred_check
        %p425 = pneg %p216
      $region42: #{residual_cnn_encoder.1} parent=11 // pred_check_branch
        %427 = sbr.rel (%p425) target = $region44
      $region43: #{residual_cnn_encoder.1} parent=11 // pred_region
        _
      $region44: #{residual_cnn_encoder.1} parent=11 // pred_fallthru
        _
      // Predicated region
      $region45: #{residual_cnn_encoder.1} parent=11 // pred_check
        %p428 = pneg %p237
      $region46: #{residual_cnn_encoder.1} parent=11 // pred_check_branch
        %430 = sbr.rel (%p428) target = $region48
      $region47: #{residual_cnn_encoder.1} parent=11 // pred_region
        _
      $region48: #{residual_cnn_encoder.1} parent=11 // pred_fallthru
        _
      // Predicated region
      $region49: #{residual_cnn_encoder.1} parent=11 // pred_check
        %p431 = pneg %p258
      $region50: #{residual_cnn_encoder.1} parent=11 // pred_check_branch
        %433 = sbr.rel (%p431) target = $region52
      $region51: #{residual_cnn_encoder.1} parent=11 // pred_region
        _
      $region52: #{residual_cnn_encoder.1} parent=11 // pred_fallthru
        _
      // Predicated region
      $region53: #{residual_cnn_encoder.1} parent=11 // pred_check
        %p434 = pneg %p279
      $region54: #{residual_cnn_encoder.1} parent=11 // pred_check_branch
        %436 = sbr.rel (%p434) target = $region56
      $region55: #{residual_cnn_encoder.1} parent=11 // pred_region
        _
      $region56: #{residual_cnn_encoder.1} parent=11 // pred_fallthru
        _
      // Predicated region
      $region57: #{residual_cnn_encoder.1} parent=11 // pred_check
        %p437 = pneg %p300
      $region58: #{residual_cnn_encoder.1} parent=11 // pred_check_branch
        %439 = sbr.rel (%p437) target = $region60
      $region59: #{residual_cnn_encoder.1} parent=11 // pred_region
        _
      $region60: #{residual_cnn_encoder.1} parent=11 // pred_fallthru
        _
      // Predicated region
      $region61: #{residual_cnn_encoder.1} parent=11 // pred_check
        %p440 = pneg %p321
      $region62: #{residual_cnn_encoder.1} parent=11 // pred_check_branch
        %442 = sbr.rel (%p440) target = $region64
      $region63: #{residual_cnn_encoder.1} parent=11 // pred_region
        _
      $region64: #{residual_cnn_encoder.1} parent=11 // pred_fallthru
        _
      // Predicated region
      $region65: #{residual_cnn_encoder.1} parent=11 // pred_check
        %p443 = pneg %p342
      $region66: #{residual_cnn_encoder.1} parent=11 // pred_check_branch
        %445 = sbr.rel (%p443) target = $region68
      $region67: #{residual_cnn_encoder.1} parent=11 // pred_region
        _
      $region68: #{residual_cnn_encoder.1} parent=11 // pred_fallthru
        _
      // Predicated region
      $region69: #{residual_cnn_encoder.1} parent=11 // pred_check
        %p446 = pneg %p363
      $region70: #{residual_cnn_encoder.1} parent=11 // pred_check_branch
        %448 = sbr.rel (%p446) target = $region72
      $region71: #{residual_cnn_encoder.1} parent=11 // pred_region
        _
      $region72: #{residual_cnn_encoder.1} parent=11 // pred_fallthru
        _
    $region12: #{residual_cnn_encoder.1} parent=5 // pred_fallthru
      _
    %p449 = scmp.lt.s32.totalorder %s22, 2
    // Predicated region
    $region73: #{residual_cnn_encoder.1} parent=5 // pred_check
      %p450 = pneg %p449
    $region74: #{residual_cnn_encoder.1} parent=5 // pred_check_branch
      %452 = sbr.rel (%p450) target = $region76
    $region75: #{residual_cnn_encoder.1} parent=5 // pred_region
      // Predicated region
      $region77: #{residual_cnn_encoder.1} parent=75 // pred_check
        %p453 = pneg %p42
      $region78: #{residual_cnn_encoder.1} parent=75 // pred_check_branch
        %455 = sbr.rel (%p453) target = $region80
      $region79: #{residual_cnn_encoder.1} parent=75 // pred_region
        %s456 = smul.u32 16, %s22
        %p457 = scmp.lt.s32.totalorder %s456, 31
        %s458 = scalar_select %p457, %s456, 31
        %s459 = smul.addr %s458, 8
        %s460 = scalar_lea.vmem %s0, %s459
        %s461 = smul.u32 16, %s22
      $region80: #{residual_cnn_encoder.1} parent=75 // pred_fallthru
        _
    $region76: #{residual_cnn_encoder.1} parent=5 // pred_fallthru
      _
    %p462 = scmp.le.s32.totalorder 1, %s22
    %p463 = scmp.lt.s32.totalorder %s22, 3
    %p464 = pnand %p462, %p463
    %p465 = pneg %p464
    // Predicated region
    $region81: #{residual_cnn_encoder.1} parent=5 // pred_check
      _
    $region82: #{residual_cnn_encoder.1} parent=5 // pred_check_branch
      %467 = sbr.rel (%p464) target = $region84
    $region83: #{residual_cnn_encoder.1} parent=5 // pred_region
      %s468 = ssub.s32 %s22, 1
      %s469 = smul.u32 16, %s27
      %p470 = scmp.lt.s32.totalorder %s469, 31
      %s471 = scalar_select %p470, %s469, 31
      %s472 = smul.addr %s471, 8
      %s473 = scalar_lea.vmem %s0, %s472
      %p474 = pneg %p48
      %p475 = pneg %p45
      %p476 = pneg %p69
      %p477 = pneg %p66
      %p478 = pneg %p90
      %p479 = pneg %p87
      %p480 = pneg %p111
      %p481 = pneg %p108
      %p482 = pneg %p132
      %p483 = pneg %p129
      %p484 = pneg %p153
      %p485 = pneg %p150
      %p486 = pneg %p174
      %p487 = pneg %p171
      %p488 = pneg %p195
      %p489 = pneg %p192
      %p490 = pneg %p216
      %p491 = pneg %p213
      %p492 = pneg %p237
      %p493 = pneg %p234
      %p494 = pneg %p258
      %p495 = pneg %p255
      %p496 = pneg %p279
      %p497 = pneg %p276
      %p498 = pneg %p300
      %p499 = pneg %p297
      %p500 = pneg %p321
      %p501 = pneg %p318
      %p502 = pneg %p342
      %p503 = pneg %p339
      %p504 = pneg %p363
      %p505 = pneg %p360
      %p506 = pneg %p389
      %p507 = pneg %p386
      %p508 = scmp.lt.s32.totalorder %s27, 1
      %s509 = scalar_select %p508, %s27, 1
      %s510 = smul.addr %s509, 8
      %s511 = scalar_lea.vmem %s16, %s510
      %s512 = smul.u32 16, %s27
      %p513 = scmp.lt.s32.totalorder %s512, 31
      %s514 = scalar_select %p513, %s512, 31
      %s515 = smul.addr %s514, 8
      %s516 = scalar_lea.vmem %s0, %s515
      %s517 = smul.u32 16, %s27
      %p518 = scmp.lt.s32.totalorder %s27, 1
      %s519 = scalar_select %p518, %s27, 1
      %s520 = smul.addr %s519, 8
      %s521 = scalar_lea.vmem %s16, %s520
      %v522 = vld [vmem:[%s516] sm:$0xff]
      %v523 = vld [vmem:[%s516 + $0x8] sm:$0xff]
      %v524 = vld [vmem:[%s516 + $0x10] sm:$0xff]
      %v525 = vld [vmem:[%s516 + $0x18] sm:$0xff]
      %v526 = vld [vmem:[%s516 + $0x20] sm:$0xff]
      %v527 = vld [vmem:[%s516 + $0x28] sm:$0xff]
      %v528 = vld [vmem:[%s516 + $0x30] sm:$0xff]
      %v529 = vld [vmem:[%s516 + $0x38] sm:$0xff]
      %v530 = vld [vmem:[%s516 + $0x40] sm:$0xff]
      %v531 = vld [vmem:[%s516 + $0x48] sm:$0xff]
      %v532 = vld [vmem:[%s516 + $0x50] sm:$0xff]
      %v533 = vld [vmem:[%s516 + $0x58] sm:$0xff]
      %v534 = vld [vmem:[%s516 + $0x60] sm:$0xff]
      %v535 = vld [vmem:[%s516 + $0x68] sm:$0xff]
      %v536 = vld [vmem:[%s516 + $0x70] sm:$0xff]
      %v537 = vld [vmem:[%s516 + $0x78] sm:$0xff]
      %v538 = vld [vmem:[%s1] sm:$0x1f]
      %vm539 = vcmask 39936
      %v541 = vsel %vm539, %v522, 0
      %v544 = vsel %vm539, %v523, 0
      %v547 = vsel %vm539, %v524, 0
      %v550 = vsel %vm539, %v525, 0
      %v553 = vsel %vm539, %v526, 0
      %v556 = vsel %vm539, %v527, 0
      %v559 = vsel %vm539, %v528, 0
      %v562 = vsel %vm539, %v529, 0
      %v565 = vsel %vm539, %v530, 0
      %v568 = vsel %vm539, %v531, 0
      %v571 = vsel %vm539, %v532, 0
      %v574 = vsel %vm539, %v533, 0
      %v577 = vsel %vm539, %v534, 0
      %v580 = vsel %vm539, %v535, 0
      %v583 = vsel %vm539, %v536, 0
      %v586 = vsel %vm539, %v537, 0
      %vm588 = vcmask 1044480
      %v590 = vsel %vm588, %v538, 0
      %592 = vmatpush.msra.mxu0 0.0
      %593 = vmatpush.msra.mxu0 0.0
      %594 = vmatpush.msra.mxu0 0.0
      %595 = vmatpush.msra.mxu0 0.0
      %596 = vmatpush.msra.mxu0 0.0
      %597 = vmatpush.msra.mxu0 0.0
      %598 = vmatpush.msra.mxu0 0.0
      %599 = vmatpush.msra.mxu0 0.0
      %600 = vmatpush.msra.mxu0 0.0
      %601 = vmatpush.msra.mxu0 0.0
      %602 = vmatpush.msra.mxu0 0.0
      %603 = vmatpush.msra.mxu0 0.0
      %604 = vmatpush.msra.mxu0 0.0
      %605 = vmatpush.msra.mxu0 0.0
      %606 = vmatpush.msra.mxu0 0.0
      %607 = vmatpush.msra.mxu0 %v590
      %608 = vmatmul.f32.gmra.mxu0 %v541
      %v609 = vpop.f32.mrf.mxu0
      %v610 = vadd.f32 0.0, %v609
      %611 = vmatmul.f32.gmra.mxu0 %v544
      %v612 = vpop.f32.mrf.mxu0
      %v613 = vadd.f32 0.0, %v612
      %614 = vmatmul.f32.gmra.mxu0 %v547
      %v615 = vpop.f32.mrf.mxu0
      %v616 = vadd.f32 0.0, %v615
      %617 = vmatmul.f32.gmra.mxu0 %v550
      %v618 = vpop.f32.mrf.mxu0
      %v619 = vadd.f32 0.0, %v618
      %620 = vmatmul.f32.gmra.mxu0 %v553
      %v621 = vpop.f32.mrf.mxu0
      %v622 = vadd.f32 0.0, %v621
      %623 = vmatmul.f32.gmra.mxu0 %v556
      %v624 = vpop.f32.mrf.mxu0
      %v625 = vadd.f32 0.0, %v624
      %626 = vmatmul.f32.gmra.mxu0 %v559
      %v627 = vpop.f32.mrf.mxu0
      %v628 = vadd.f32 0.0, %v627
      %629 = vmatmul.f32.gmra.mxu0 %v562
      %v630 = vpop.f32.mrf.mxu0
      %v631 = vadd.f32 0.0, %v630
      %632 = vmatmul.f32.gmra.mxu0 %v565
      %v633 = vpop.f32.mrf.mxu0
      %v634 = vadd.f32 0.0, %v633
      %635 = vmatmul.f32.gmra.mxu0 %v568
      %v636 = vpop.f32.mrf.mxu0
      %v637 = vadd.f32 0.0, %v636
      %638 = vmatmul.f32.gmra.mxu0 %v571
      %v639 = vpop.f32.mrf.mxu0
      %v640 = vadd.f32 0.0, %v639
      %641 = vmatmul.f32.gmra.mxu0 %v574
      %v642 = vpop.f32.mrf.mxu0
      %v643 = vadd.f32 0.0, %v642
      %644 = vmatmul.f32.gmra.mxu0 %v577
      %v645 = vpop.f32.mrf.mxu0
      %v646 = vadd.f32 0.0, %v645
      %647 = vmatmul.f32.gmra.mxu0 %v580
      %v648 = vpop.f32.mrf.mxu0
      %v649 = vadd.f32 0.0, %v648
      %650 = vmatmul.f32.gmra.mxu0 %v583
      %v651 = vpop.f32.mrf.mxu0
      %v652 = vadd.f32 0.0, %v651
      %653 = vmatmul.f32.gmra.mxu0 %v586
      %v654 = vpop.f32.mrf.mxu0
      %v655 = vadd.f32 0.0, %v654
      %656 = vdwg.mxu0
      %v657 = vld [vmem:[%s2] sm:$0x1]
      %v659 = vperm.slane %v657, 0
      %v661 = vmul.f32 %v610, %v659
      %v662 = vmul.f32 %v613, %v659
      %v663 = vmul.f32 %v616, %v659
      %v664 = vmul.f32 %v619, %v659
      %v665 = vmul.f32 %v622, %v659
      %v666 = vmul.f32 %v625, %v659
      %v667 = vmul.f32 %v628, %v659
      %v668 = vmul.f32 %v631, %v659
      %v669 = vmul.f32 %v634, %v659
      %v670 = vmul.f32 %v637, %v659
      %v671 = vmul.f32 %v640, %v659
      %v672 = vmul.f32 %v643, %v659
      %v673 = vmul.f32 %v646, %v659
      %v674 = vmul.f32 %v649, %v659
      %v675 = vmul.f32 %v652, %v659
      %v676 = vmul.f32 %v655, %v659
      %v677 = vld [vmem:[%s3] sm:$0x1]
      %v679 = vperm.slane %v677, 0
      %v681 = vadd.f32 %v661, %v679
      %v682 = vadd.f32 %v662, %v679
      %v683 = vadd.f32 %v663, %v679
      %v684 = vadd.f32 %v664, %v679
      %v685 = vadd.f32 %v665, %v679
      %v686 = vadd.f32 %v666, %v679
      %v687 = vadd.f32 %v667, %v679
      %v688 = vadd.f32 %v668, %v679
      %v689 = vadd.f32 %v669, %v679
      %v690 = vadd.f32 %v670, %v679
      %v691 = vadd.f32 %v671, %v679
      %v692 = vadd.f32 %v672, %v679
      %v693 = vadd.f32 %v673, %v679
      %v694 = vadd.f32 %v674, %v679
      %v695 = vadd.f32 %v675, %v679
      %v696 = vadd.f32 %v676, %v679
      %v697 = vmax.f32 %v681, 0.0
      %v698 = vmax.f32 %v682, 0.0
      %v699 = vmax.f32 %v683, 0.0
      %v700 = vmax.f32 %v684, 0.0
      %v701 = vmax.f32 %v685, 0.0
      %v702 = vmax.f32 %v686, 0.0
      %v703 = vmax.f32 %v687, 0.0
      %v704 = vmax.f32 %v688, 0.0
      %v705 = vmax.f32 %v689, 0.0
      %v706 = vmax.f32 %v690, 0.0
      %v707 = vmax.f32 %v691, 0.0
      %v708 = vmax.f32 %v692, 0.0
      %v709 = vmax.f32 %v693, 0.0
      %v710 = vmax.f32 %v694, 0.0
      %v711 = vmax.f32 %v695, 0.0
      %v712 = vmax.f32 %v696, 0.0
      %vm729 = vcmask 1041408
      %v730 = vrot.slane %v697, 6
      %v731 = vrot.slane %v698, 6
      %v732 = vsel %vm729, %v730, %v731
      %v733 = vrot.slane %v699, 6
      %v734 = vrot.slane %v700, 6
      %v735 = vsel %vm729, %v733, %v734
      %v736 = vrot.slane %v701, 6
      %v737 = vrot.slane %v702, 6
      %v738 = vsel %vm729, %v736, %v737
      %v739 = vrot.slane %v703, 6
      %v740 = vrot.slane %v704, 6
      %v741 = vsel %vm729, %v739, %v740
      %v742 = vrot.slane %v705, 6
      %v743 = vrot.slane %v706, 6
      %v744 = vsel %vm729, %v742, %v743
      %v745 = vrot.slane %v707, 6
      %v746 = vrot.slane %v708, 6
      %v747 = vsel %vm729, %v745, %v746
      %v748 = vrot.slane %v709, 6
      %v749 = vrot.slane %v710, 6
      %v750 = vsel %vm729, %v748, %v749
      %v751 = vrot.slane %v711, 6
      %v752 = vrot.slane %v712, 6
      %v753 = vsel %vm729, %v751, %v752
      %v778 = vsel %vm729, 0.0, %v730
      %v779 = vsel %vm729, 0.0, %v733
      %v780 = vsel %vm729, 0.0, %v736
      %v781 = vsel %vm729, 0.0, %v739
      %v782 = vsel %vm729, 0.0, %v742
      %v783 = vsel %vm729, 0.0, %v745
      %v784 = vsel %vm729, 0.0, %v748
      %v785 = vsel %vm729, 0.0, %v751
      %v786 = vsel %vm729, %v731, 0.0
      %v787 = vsel %vm729, %v734, 0.0
      %v788 = vsel %vm729, %v737, 0.0
      %v789 = vsel %vm729, %v740, 0.0
      %v790 = vsel %vm729, %v743, 0.0
      %v791 = vsel %vm729, %v746, 0.0
      %v792 = vsel %vm729, %v749, 0.0
      %v793 = vsel %vm729, %v752, 0.0
      %vm810 = vcmask 1046528
      %v811 = vrot.slane %v778, 1
      %v812 = vrot.slane %v732, 1
      %v813 = vsel %vm810, %v811, %v812
      %v814 = vrot.slane %v786, 1
      %v815 = vsel %vm810, %v812, %v814
      %v816 = vrot.slane %v779, 1
      %v817 = vrot.slane %v735, 1
      %v818 = vsel %vm810, %v816, %v817
      %v819 = vrot.slane %v787, 1
      %v820 = vsel %vm810, %v817, %v819
      %v821 = vrot.slane %v780, 1
      %v822 = vrot.slane %v738, 1
      %v823 = vsel %vm810, %v821, %v822
      %v824 = vrot.slane %v788, 1
      %v825 = vsel %vm810, %v822, %v824
      %v826 = vrot.slane %v781, 1
      %v827 = vrot.slane %v741, 1
      %v828 = vsel %vm810, %v826, %v827
      %v829 = vrot.slane %v789, 1
      %v830 = vsel %vm810, %v827, %v829
      %v831 = vrot.slane %v782, 1
      %v832 = vrot.slane %v744, 1
      %v833 = vsel %vm810, %v831, %v832
      %v834 = vrot.slane %v790, 1
      %v835 = vsel %vm810, %v832, %v834
      %v836 = vrot.slane %v783, 1
      %v837 = vrot.slane %v747, 1
      %v838 = vsel %vm810, %v836, %v837
      %v839 = vrot.slane %v791, 1
      %v840 = vsel %vm810, %v837, %v839
      %v841 = vrot.slane %v784, 1
      %v842 = vrot.slane %v750, 1
      %v843 = vsel %vm810, %v841, %v842
      %v844 = vrot.slane %v792, 1
      %v845 = vsel %vm810, %v842, %v844
      %v846 = vrot.slane %v785, 1
      %v847 = vrot.slane %v753, 1
      %v848 = vsel %vm810, %v846, %v847
      %v849 = vrot.slane %v793, 1
      %v850 = vsel %vm810, %v847, %v849
      %851 = vrot.lane.b32.xlu0 %v813, 64
      %v852 = vpop.permute.xlu0 %851
      %853 = vrot.lane.b32.xlu0 %v815, 64
      %v854 = vpop.permute.xlu0 %853
      %855 = vrot.lane.b32.xlu0 %v818, 64
      %v856 = vpop.permute.xlu0 %855
      %857 = vrot.lane.b32.xlu0 %v820, 64
      %v858 = vpop.permute.xlu0 %857
      %859 = vrot.lane.b32.xlu0 %v823, 64
      %v860 = vpop.permute.xlu0 %859
      %861 = vrot.lane.b32.xlu0 %v825, 64
      %v862 = vpop.permute.xlu0 %861
      %863 = vrot.lane.b32.xlu0 %v828, 64
      %v864 = vpop.permute.xlu0 %863
      %865 = vrot.lane.b32.xlu0 %v830, 64
      %v866 = vpop.permute.xlu0 %865
      %867 = vrot.lane.b32.xlu0 %v833, 64
      %v868 = vpop.permute.xlu0 %867
      %869 = vrot.lane.b32.xlu0 %v835, 64
      %v870 = vpop.permute.xlu0 %869
      %871 = vrot.lane.b32.xlu0 %v838, 64
      %v872 = vpop.permute.xlu0 %871
      %873 = vrot.lane.b32.xlu0 %v840, 64
      %v874 = vpop.permute.xlu0 %873
      %875 = vrot.lane.b32.xlu0 %v843, 64
      %v876 = vpop.permute.xlu0 %875
      %877 = vrot.lane.b32.xlu0 %v845, 64
      %v878 = vpop.permute.xlu0 %877
      %879 = vrot.lane.b32.xlu0 %v848, 64
      %v880 = vpop.permute.xlu0 %879
      %881 = vrot.lane.b32.xlu0 %v850, 64
      %v882 = vpop.permute.xlu0 %881
      %vm899 = vcmask 1045504
      %v900 = vrot.slane %v778, 2
      %v901 = vrot.slane %v732, 2
      %v902 = vsel %vm899, %v900, %v901
      %v903 = vrot.slane %v786, 2
      %v904 = vsel %vm899, %v901, %v903
      %v905 = vrot.slane %v779, 2
      %v906 = vrot.slane %v735, 2
      %v907 = vsel %vm899, %v905, %v906
      %v908 = vrot.slane %v787, 2
      %v909 = vsel %vm899, %v906, %v908
      %v910 = vrot.slane %v780, 2
      %v911 = vrot.slane %v738, 2
      %v912 = vsel %vm899, %v910, %v911
      %v913 = vrot.slane %v788, 2
      %v914 = vsel %vm899, %v911, %v913
      %v915 = vrot.slane %v781, 2
      %v916 = vrot.slane %v741, 2
      %v917 = vsel %vm899, %v915, %v916
      %v918 = vrot.slane %v789, 2
      %v919 = vsel %vm899, %v916, %v918
      %v920 = vrot.slane %v782, 2
      %v921 = vrot.slane %v744, 2
      %v922 = vsel %vm899, %v920, %v921
      %v923 = vrot.slane %v790, 2
      %v924 = vsel %vm899, %v921, %v923
      %v925 = vrot.slane %v783, 2
      %v926 = vrot.slane %v747, 2
      %v927 = vsel %vm899, %v925, %v926
      %v928 = vrot.slane %v791, 2
      %v929 = vsel %vm899, %v926, %v928
      %v930 = vrot.slane %v784, 2
      %v931 = vrot.slane %v750, 2
      %v932 = vsel %vm899, %v930, %v931
      %v933 = vrot.slane %v792, 2
      %v934 = vsel %vm899, %v931, %v933
      %v935 = vrot.slane %v785, 2
      %v936 = vrot.slane %v753, 2
      %v937 = vsel %vm899, %v935, %v936
      %v938 = vrot.slane %v793, 2
      %v939 = vsel %vm899, %v936, %v938
      %v956 = vrot.slane %v778, 3
      %v957 = vrot.slane %v732, 3
      %v958 = vsel %vm588, %v956, %v957
      %v959 = vrot.slane %v786, 3
      %v960 = vsel %vm588, %v957, %v959
      %v961 = vrot.slane %v779, 3
      %v962 = vrot.slane %v735, 3
      %v963 = vsel %vm588, %v961, %v962
      %v964 = vrot.slane %v787, 3
      %v965 = vsel %vm588, %v962, %v964
      %v966 = vrot.slane %v780, 3
      %v967 = vrot.slane %v738, 3
      %v968 = vsel %vm588, %v966, %v967
      %v969 = vrot.slane %v788, 3
      %v970 = vsel %vm588, %v967, %v969
      %v971 = vrot.slane %v781, 3
      %v972 = vrot.slane %v741, 3
      %v973 = vsel %vm588, %v971, %v972
      %v974 = vrot.slane %v789, 3
      %v975 = vsel %vm588, %v972, %v974
      %v976 = vrot.slane %v782, 3
      %v977 = vrot.slane %v744, 3
      %v978 = vsel %vm588, %v976, %v977
      %v979 = vrot.slane %v790, 3
      %v980 = vsel %vm588, %v977, %v979
      %v981 = vrot.slane %v783, 3
      %v982 = vrot.slane %v747, 3
      %v983 = vsel %vm588, %v981, %v982
      %v984 = vrot.slane %v791, 3
      %v985 = vsel %vm588, %v982, %v984
      %v986 = vrot.slane %v784, 3
      %v987 = vrot.slane %v750, 3
      %v988 = vsel %vm588, %v986, %v987
      %v989 = vrot.slane %v792, 3
      %v990 = vsel %vm588, %v987, %v989
      %v991 = vrot.slane %v785, 3
      %v992 = vrot.slane %v753, 3
      %v993 = vsel %vm588, %v991, %v992
      %v994 = vrot.slane %v793, 3
      %v995 = vsel %vm588, %v992, %v994
      %996 = vrot.lane.b32.xlu0 %v958, 64
      %v997 = vpop.permute.xlu0 %996
      %998 = vrot.lane.b32.xlu0 %v960, 64
      %v999 = vpop.permute.xlu0 %998
      %1000 = vrot.lane.b32.xlu0 %v963, 64
      %v1001 = vpop.permute.xlu0 %1000
      %1002 = vrot.lane.b32.xlu0 %v965, 64
      %v1003 = vpop.permute.xlu0 %1002
      %1004 = vrot.lane.b32.xlu0 %v968, 64
      %v1005 = vpop.permute.xlu0 %1004
      %1006 = vrot.lane.b32.xlu0 %v970, 64
      %v1007 = vpop.permute.xlu0 %1006
      %1008 = vrot.lane.b32.xlu0 %v973, 64
      %v1009 = vpop.permute.xlu0 %1008
      %1010 = vrot.lane.b32.xlu0 %v975, 64
      %v1011 = vpop.permute.xlu0 %1010
      %1012 = vrot.lane.b32.xlu0 %v978, 64
      %v1013 = vpop.permute.xlu0 %1012
      %1014 = vrot.lane.b32.xlu0 %v980, 64
      %v1015 = vpop.permute.xlu0 %1014
      %1016 = vrot.lane.b32.xlu0 %v983, 64
      %v1017 = vpop.permute.xlu0 %1016
      %1018 = vrot.lane.b32.xlu0 %v985, 64
      %v1019 = vpop.permute.xlu0 %1018
      %1020 = vrot.lane.b32.xlu0 %v988, 64
      %v1021 = vpop.permute.xlu0 %1020
      %1022 = vrot.lane.b32.xlu0 %v990, 64
      %v1023 = vpop.permute.xlu0 %1022
      %1024 = vrot.lane.b32.xlu0 %v993, 64
      %v1025 = vpop.permute.xlu0 %1024
      %1026 = vrot.lane.b32.xlu0 %v995, 64
      %v1027 = vpop.permute.xlu0 %1026
      %vm1044 = vcmask 1043456
      %v1045 = vrot.slane %v778, 4
      %v1046 = vrot.slane %v732, 4
      %v1047 = vsel %vm1044, %v1045, %v1046
      %v1048 = vrot.slane %v786, 4
      %v1049 = vsel %vm1044, %v1046, %v1048
      %v1050 = vrot.slane %v779, 4
      %v1051 = vrot.slane %v735, 4
      %v1052 = vsel %vm1044, %v1050, %v1051
      %v1053 = vrot.slane %v787, 4
      %v1054 = vsel %vm1044, %v1051, %v1053
      %v1055 = vrot.slane %v780, 4
      %v1056 = vrot.slane %v738, 4
      %v1057 = vsel %vm1044, %v1055, %v1056
      %v1058 = vrot.slane %v788, 4
      %v1059 = vsel %vm1044, %v1056, %v1058
      %v1060 = vrot.slane %v781, 4
      %v1061 = vrot.slane %v741, 4
      %v1062 = vsel %vm1044, %v1060, %v1061
      %v1063 = vrot.slane %v789, 4
      %v1064 = vsel %vm1044, %v1061, %v1063
      %v1065 = vrot.slane %v782, 4
      %v1066 = vrot.slane %v744, 4
      %v1067 = vsel %vm1044, %v1065, %v1066
      %v1068 = vrot.slane %v790, 4
      %v1069 = vsel %vm1044, %v1066, %v1068
      %v1070 = vrot.slane %v783, 4
      %v1071 = vrot.slane %v747, 4
      %v1072 = vsel %vm1044, %v1070, %v1071
      %v1073 = vrot.slane %v791, 4
      %v1074 = vsel %vm1044, %v1071, %v1073
      %v1075 = vrot.slane %v784, 4
      %v1076 = vrot.slane %v750, 4
      %v1077 = vsel %vm1044, %v1075, %v1076
      %v1078 = vrot.slane %v792, 4
      %v1079 = vsel %vm1044, %v1076, %v1078
      %v1080 = vrot.slane %v785, 4
      %v1081 = vrot.slane %v753, 4
      %v1082 = vsel %vm1044, %v1080, %v1081
      %v1083 = vrot.slane %v793, 4
      %v1084 = vsel %vm1044, %v1081, %v1083
      %vm1085 = vcmask 523264
      %v1086 = vsel %vm1085, %v778, %v852
      %v1087 = vsel %vm1085, %v732, %v854
      %v1088 = vsel %vm1085, %v779, %v856
      %v1089 = vsel %vm1085, %v735, %v858
      %v1090 = vsel %vm1085, %v780, %v860
      %v1091 = vsel %vm1085, %v738, %v862
      %v1092 = vsel %vm1085, %v781, %v864
      %v1093 = vsel %vm1085, %v741, %v866
      %v1094 = vsel %vm1085, %v782, %v868
      %v1095 = vsel %vm1085, %v744, %v870
      %v1096 = vsel %vm1085, %v783, %v872
      %v1097 = vsel %vm1085, %v747, %v874
      %v1098 = vsel %vm1085, %v784, %v876
      %v1099 = vsel %vm1085, %v750, %v878
      %v1100 = vsel %vm1085, %v785, %v880
      %v1101 = vsel %vm1085, %v753, %v882
      %v1102 = vsel %vm1085, %v902, %v997
      %v1103 = vsel %vm1085, %v904, %v999
      %v1104 = vsel %vm1085, %v907, %v1001
      %v1105 = vsel %vm1085, %v909, %v1003
      %v1106 = vsel %vm1085, %v912, %v1005
      %v1107 = vsel %vm1085, %v914, %v1007
      %v1108 = vsel %vm1085, %v917, %v1009
      %v1109 = vsel %vm1085, %v919, %v1011
      %v1110 = vsel %vm1085, %v922, %v1013
      %v1111 = vsel %vm1085, %v924, %v1015
      %v1112 = vsel %vm1085, %v927, %v1017
      %v1113 = vsel %vm1085, %v929, %v1019
      %v1114 = vsel %vm1085, %v932, %v1021
      %v1115 = vsel %vm1085, %v934, %v1023
      %v1116 = vsel %vm1085, %v937, %v1025
      %v1117 = vsel %vm1085, %v939, %v1027
      %v1118 = vld [vmem:[%s4] sm:$0xff]
      %v1119 = vld [vmem:[%s4 + $0x8] sm:$0xff]
      %v1120 = vld [vmem:[%s4 + $0x10] sm:$0xff]
      %v1121 = vld [vmem:[%s4 + $0x18] sm:$0xff]
      %v1122 = vld [vmem:[%s4 + $0x20] sm:$0xff]
      %v1123 = vld [vmem:[%s4 + $0x28] sm:$0xff]
      %v1124 = vld [vmem:[%s4 + $0x30] sm:$0xff]
      %v1125 = vld [vmem:[%s4 + $0x38] sm:$0xff]
      %v1126 = vld [vmem:[%s4 + $0x40] sm:$0xff]
      %v1127 = vld [vmem:[%s4 + $0x48] sm:$0xff]
      %v1128 = vld [vmem:[%s4 + $0x50] sm:$0xff]
      %v1129 = vld [vmem:[%s4 + $0x58] sm:$0xff]
      %v1130 = vld [vmem:[%s4 + $0x60] sm:$0xff]
      %v1131 = vld [vmem:[%s4 + $0x68] sm:$0xff]
      %v1132 = vld [vmem:[%s4 + $0x70] sm:$0xff]
      %v1133 = vld [vmem:[%s4 + $0x78] sm:$0xff]
      %v1134 = vld [vmem:[%s4 + $0x80] sm:$0xff]
      %v1135 = vld [vmem:[%s4 + $0x88] sm:$0xff]
      %v1136 = vld [vmem:[%s4 + $0x90] sm:$0xff]
      %v1137 = vld [vmem:[%s4 + $0x98] sm:$0xff]
      %v1138 = vld [vmem:[%s4 + $0xa0] sm:$0xff]
      %v1139 = vld [vmem:[%s4 + $0xa8] sm:$0xff]
      %v1140 = vld [vmem:[%s4 + $0xb0] sm:$0xff]
      %v1141 = vld [vmem:[%s4 + $0xb8] sm:$0xff]
      %v1142 = vld [vmem:[%s4 + $0xc0] sm:$0xff]
      %v1143 = vld [vmem:[%s4 + $0xc8] sm:$0xff]
      %v1144 = vld [vmem:[%s4 + $0xd0] sm:$0xff]
      %v1145 = vld [vmem:[%s4 + $0xd8] sm:$0xff]
      %v1146 = vld [vmem:[%s4 + $0xe0] sm:$0xff]
      %v1147 = vld [vmem:[%s4 + $0xe8] sm:$0xff]
      %v1148 = vld [vmem:[%s4 + $0xf0] sm:$0xff]
      %v1149 = vld [vmem:[%s4 + $0xf8] sm:$0xff]
      %v1150 = vld [vmem:[%s4 + $0x100] sm:$0xff]
      %v1151 = vld [vmem:[%s4 + $0x108] sm:$0xff]
      %v1152 = vld [vmem:[%s4 + $0x110] sm:$0xff]
      %v1153 = vld [vmem:[%s4 + $0x118] sm:$0xff]
      %v1154 = vld [vmem:[%s4 + $0x120] sm:$0xff]
      %v1155 = vld [vmem:[%s4 + $0x128] sm:$0xff]
      %v1156 = vld [vmem:[%s4 + $0x130] sm:$0xff]
      %v1157 = vld [vmem:[%s4 + $0x138] sm:$0xff]
      %v1158 = vsel %vm1085, %v1047, 0
      %v1160 = vsel %vm1085, %v1049, 0
      %v1162 = vsel %vm1085, %v1052, 0
      %v1164 = vsel %vm1085, %v1054, 0
      %v1166 = vsel %vm1085, %v1057, 0
      %v1168 = vsel %vm1085, %v1059, 0
      %v1170 = vsel %vm1085, %v1062, 0
      %v1172 = vsel %vm1085, %v1064, 0
      %v1174 = vsel %vm1085, %v1067, 0
      %v1176 = vsel %vm1085, %v1069, 0
      %v1178 = vsel %vm1085, %v1072, 0
      %v1180 = vsel %vm1085, %v1074, 0
      %v1182 = vsel %vm1085, %v1077, 0
      %v1184 = vsel %vm1085, %v1079, 0
      %v1186 = vsel %vm1085, %v1082, 0
      %v1188 = vsel %vm1085, %v1084, 0
      %1190 = vmatpush.msra.mxu0 %v1133
      %1191 = vmatpush.msra.mxu0 %v1132
      %1192 = vmatpush.msra.mxu0 %v1131
      %1193 = vmatpush.msra.mxu0 %v1130
      %1194 = vmatpush.msra.mxu0 %v1129
      %1195 = vmatpush.msra.mxu0 %v1128
      %1196 = vmatpush.msra.mxu0 %v1127
      %1197 = vmatpush.msra.mxu0 %v1126
      %1198 = vmatpush.msra.mxu0 %v1125
      %1199 = vmatpush.msra.mxu0 %v1124
      %1200 = vmatpush.msra.mxu0 %v1123
      %1201 = vmatpush.msra.mxu0 %v1122
      %1202 = vmatpush.msra.mxu0 %v1121
      %1203 = vmatpush.msra.mxu0 %v1120
      %1204 = vmatpush.msra.mxu0 %v1119
      %1205 = vmatpush.msra.mxu0 %v1118
      %1206 = vmatmul.f32.gmra.mxu0 %v1086
      %v1207 = vpop.f32.mrf.mxu0
      %v1208 = vadd.f32 0.0, %v1207
      %1209 = vmatmul.f32.gmra.mxu0 %v1087
      %v1210 = vpop.f32.mrf.mxu0
      %v1211 = vadd.f32 0.0, %v1210
      %1212 = vmatmul.f32.gmra.mxu0 %v1088
      %v1213 = vpop.f32.mrf.mxu0
      %v1214 = vadd.f32 0.0, %v1213
      %1215 = vmatmul.f32.gmra.mxu0 %v1089
      %v1216 = vpop.f32.mrf.mxu0
      %v1217 = vadd.f32 0.0, %v1216
      %1218 = vmatmul.f32.gmra.mxu0 %v1090
      %v1219 = vpop.f32.mrf.mxu0
      %v1220 = vadd.f32 0.0, %v1219
      %1221 = vmatmul.f32.gmra.mxu0 %v1091
      %v1222 = vpop.f32.mrf.mxu0
      %v1223 = vadd.f32 0.0, %v1222
      %1224 = vmatmul.f32.gmra.mxu0 %v1092
      %v1225 = vpop.f32.mrf.mxu0
      %v1226 = vadd.f32 0.0, %v1225
      %1227 = vmatmul.f32.gmra.mxu0 %v1093
      %v1228 = vpop.f32.mrf.mxu0
      %v1229 = vadd.f32 0.0, %v1228
      %1230 = vmatmul.f32.gmra.mxu0 %v1094
      %v1231 = vpop.f32.mrf.mxu0
      %v1232 = vadd.f32 0.0, %v1231
      %1233 = vmatmul.f32.gmra.mxu0 %v1095
      %v1234 = vpop.f32.mrf.mxu0
      %v1235 = vadd.f32 0.0, %v1234
      %1236 = vmatmul.f32.gmra.mxu0 %v1096
      %v1237 = vpop.f32.mrf.mxu0
      %v1238 = vadd.f32 0.0, %v1237
      %1239 = vmatmul.f32.gmra.mxu0 %v1097
      %v1240 = vpop.f32.mrf.mxu0
      %v1241 = vadd.f32 0.0, %v1240
      %1242 = vmatmul.f32.gmra.mxu0 %v1098
      %v1243 = vpop.f32.mrf.mxu0
      %v1244 = vadd.f32 0.0, %v1243
      %1245 = vmatmul.f32.gmra.mxu0 %v1099
      %v1246 = vpop.f32.mrf.mxu0
      %v1247 = vadd.f32 0.0, %v1246
      %1248 = vmatmul.f32.gmra.mxu0 %v1100
      %v1249 = vpop.f32.mrf.mxu0
      %v1250 = vadd.f32 0.0, %v1249
      %1251 = vmatmul.f32.gmra.mxu0 %v1101
      %v1252 = vpop.f32.mrf.mxu0
      %v1253 = vadd.f32 0.0, %v1252
      %1254 = vdwg.mxu0
      %1255 = vmatpush.msra.mxu0 %v1149
      %1256 = vmatpush.msra.mxu0 %v1148
      %1257 = vmatpush.msra.mxu0 %v1147
      %1258 = vmatpush.msra.mxu0 %v1146
      %1259 = vmatpush.msra.mxu0 %v1145
      %1260 = vmatpush.msra.mxu0 %v1144
      %1261 = vmatpush.msra.mxu0 %v1143
      %1262 = vmatpush.msra.mxu0 %v1142
      %1263 = vmatpush.msra.mxu0 %v1141
      %1264 = vmatpush.msra.mxu0 %v1140
      %1265 = vmatpush.msra.mxu0 %v1139
      %1266 = vmatpush.msra.mxu0 %v1138
      %1267 = vmatpush.msra.mxu0 %v1137
      %1268 = vmatpush.msra.mxu0 %v1136
      %1269 = vmatpush.msra.mxu0 %v1135
      %1270 = vmatpush.msra.mxu0 %v1134
      %1271 = vmatmul.f32.gmra.mxu0 %v1102
      %v1272 = vpop.f32.mrf.mxu0
      %v1273 = vadd.f32 %v1208, %v1272
      %1274 = vmatmul.f32.gmra.mxu0 %v1103
      %v1275 = vpop.f32.mrf.mxu0
      %v1276 = vadd.f32 %v1211, %v1275
      %1277 = vmatmul.f32.gmra.mxu0 %v1104
      %v1278 = vpop.f32.mrf.mxu0
      %v1279 = vadd.f32 %v1214, %v1278
      %1280 = vmatmul.f32.gmra.mxu0 %v1105
      %v1281 = vpop.f32.mrf.mxu0
      %v1282 = vadd.f32 %v1217, %v1281
      %1283 = vmatmul.f32.gmra.mxu0 %v1106
      %v1284 = vpop.f32.mrf.mxu0
      %v1285 = vadd.f32 %v1220, %v1284
      %1286 = vmatmul.f32.gmra.mxu0 %v1107
      %v1287 = vpop.f32.mrf.mxu0
      %v1288 = vadd.f32 %v1223, %v1287
      %1289 = vmatmul.f32.gmra.mxu0 %v1108
      %v1290 = vpop.f32.mrf.mxu0
      %v1291 = vadd.f32 %v1226, %v1290
      %1292 = vmatmul.f32.gmra.mxu0 %v1109
      %v1293 = vpop.f32.mrf.mxu0
      %v1294 = vadd.f32 %v1229, %v1293
      %1295 = vmatmul.f32.gmra.mxu0 %v1110
      %v1296 = vpop.f32.mrf.mxu0
      %v1297 = vadd.f32 %v1232, %v1296
      %1298 = vmatmul.f32.gmra.mxu0 %v1111
      %v1299 = vpop.f32.mrf.mxu0
      %v1300 = vadd.f32 %v1235, %v1299
      %1301 = vmatmul.f32.gmra.mxu0 %v1112
      %v1302 = vpop.f32.mrf.mxu0
      %v1303 = vadd.f32 %v1238, %v1302
      %1304 = vmatmul.f32.gmra.mxu0 %v1113
      %v1305 = vpop.f32.mrf.mxu0
      %v1306 = vadd.f32 %v1241, %v1305
      %1307 = vmatmul.f32.gmra.mxu0 %v1114
      %v1308 = vpop.f32.mrf.mxu0
      %v1309 = vadd.f32 %v1244, %v1308
      %1310 = vmatmul.f32.gmra.mxu0 %v1115
      %v1311 = vpop.f32.mrf.mxu0
      %v1312 = vadd.f32 %v1247, %v1311
      %1313 = vmatmul.f32.gmra.mxu0 %v1116
      %v1314 = vpop.f32.mrf.mxu0
      %v1315 = vadd.f32 %v1250, %v1314
      %1316 = vmatmul.f32.gmra.mxu0 %v1117
      %v1317 = vpop.f32.mrf.mxu0
      %v1318 = vadd.f32 %v1253, %v1317
      %1319 = vdwg.mxu0
      %1320 = vmatpush.msra.mxu0 0.0
      %1321 = vmatpush.msra.mxu0 0.0
      %1322 = vmatpush.msra.mxu0 0.0
      %1323 = vmatpush.msra.mxu0 0.0
      %1324 = vmatpush.msra.mxu0 0.0
      %1325 = vmatpush.msra.mxu0 0.0
      %1326 = vmatpush.msra.mxu0 0.0
      %1327 = vmatpush.msra.mxu0 0.0
      %1328 = vmatpush.msra.mxu0 %v1157
      %1329 = vmatpush.msra.mxu0 %v1156
      %1330 = vmatpush.msra.mxu0 %v1155
      %1331 = vmatpush.msra.mxu0 %v1154
      %1332 = vmatpush.msra.mxu0 %v1153
      %1333 = vmatpush.msra.mxu0 %v1152
      %1334 = vmatpush.msra.mxu0 %v1151
      %1335 = vmatpush.msra.mxu0 %v1150
      %1336 = vmatmul.f32.gmra.mxu0 %v1158
      %v1337 = vpop.f32.mrf.mxu0
      %v1338 = vadd.f32 %v1273, %v1337
      %1339 = vmatmul.f32.gmra.mxu0 %v1160
      %v1340 = vpop.f32.mrf.mxu0
      %v1341 = vadd.f32 %v1276, %v1340
      %1342 = vmatmul.f32.gmra.mxu0 %v1162
      %v1343 = vpop.f32.mrf.mxu0
      %v1344 = vadd.f32 %v1279, %v1343
      %1345 = vmatmul.f32.gmra.mxu0 %v1164
      %v1346 = vpop.f32.mrf.mxu0
      %v1347 = vadd.f32 %v1282, %v1346
      %1348 = vmatmul.f32.gmra.mxu0 %v1166
      %v1349 = vpop.f32.mrf.mxu0
      %v1350 = vadd.f32 %v1285, %v1349
      %1351 = vmatmul.f32.gmra.mxu0 %v1168
      %v1352 = vpop.f32.mrf.mxu0
      %v1353 = vadd.f32 %v1288, %v1352
      %1354 = vmatmul.f32.gmra.mxu0 %v1170
      %v1355 = vpop.f32.mrf.mxu0
      %v1356 = vadd.f32 %v1291, %v1355
      %1357 = vmatmul.f32.gmra.mxu0 %v1172
      %v1358 = vpop.f32.mrf.mxu0
      %v1359 = vadd.f32 %v1294, %v1358
      %1360 = vmatmul.f32.gmra.mxu0 %v1174
      %v1361 = vpop.f32.mrf.mxu0
      %v1362 = vadd.f32 %v1297, %v1361
      %1363 = vmatmul.f32.gmra.mxu0 %v1176
      %v1364 = vpop.f32.mrf.mxu0
      %v1365 = vadd.f32 %v1300, %v1364
      %1366 = vmatmul.f32.gmra.mxu0 %v1178
      %v1367 = vpop.f32.mrf.mxu0
      %v1368 = vadd.f32 %v1303, %v1367
      %1369 = vmatmul.f32.gmra.mxu0 %v1180
      %v1370 = vpop.f32.mrf.mxu0
      %v1371 = vadd.f32 %v1306, %v1370
      %1372 = vmatmul.f32.gmra.mxu0 %v1182
      %v1373 = vpop.f32.mrf.mxu0
      %v1374 = vadd.f32 %v1309, %v1373
      %1375 = vmatmul.f32.gmra.mxu0 %v1184
      %v1376 = vpop.f32.mrf.mxu0
      %v1377 = vadd.f32 %v1312, %v1376
      %1378 = vmatmul.f32.gmra.mxu0 %v1186
      %v1379 = vpop.f32.mrf.mxu0
      %v1380 = vadd.f32 %v1315, %v1379
      %1381 = vmatmul.f32.gmra.mxu0 %v1188
      %v1382 = vpop.f32.mrf.mxu0
      %v1383 = vadd.f32 %v1318, %v1382
      %1384 = vdwg.mxu0
      %v1385 = vld [vmem:[%s5] sm:$0x1]
      %v1387 = vperm.slane %v1385, 0
      %v1389 = vmul.f32 %v1338, %v1387
      %v1390 = vmul.f32 %v1341, %v1387
      %v1391 = vmul.f32 %v1344, %v1387
      %v1392 = vmul.f32 %v1347, %v1387
      %v1393 = vmul.f32 %v1350, %v1387
      %v1394 = vmul.f32 %v1353, %v1387
      %v1395 = vmul.f32 %v1356, %v1387
      %v1396 = vmul.f32 %v1359, %v1387
      %v1397 = vmul.f32 %v1362, %v1387
      %v1398 = vmul.f32 %v1365, %v1387
      %v1399 = vmul.f32 %v1368, %v1387
      %v1400 = vmul.f32 %v1371, %v1387
      %v1401 = vmul.f32 %v1374, %v1387
      %v1402 = vmul.f32 %v1377, %v1387
      %v1403 = vmul.f32 %v1380, %v1387
      %v1404 = vmul.f32 %v1383, %v1387
      %v1405 = vld [vmem:[%s6] sm:$0x1]
      %v1407 = vperm.slane %v1405, 0
      %v1409 = vadd.f32 %v1389, %v1407
      %v1410 = vadd.f32 %v1390, %v1407
      %v1411 = vadd.f32 %v1391, %v1407
      %v1412 = vadd.f32 %v1392, %v1407
      %v1413 = vadd.f32 %v1393, %v1407
      %v1414 = vadd.f32 %v1394, %v1407
      %v1415 = vadd.f32 %v1395, %v1407
      %v1416 = vadd.f32 %v1396, %v1407
      %v1417 = vadd.f32 %v1397, %v1407
      %v1418 = vadd.f32 %v1398, %v1407
      %v1419 = vadd.f32 %v1399, %v1407
      %v1420 = vadd.f32 %v1400, %v1407
      %v1421 = vadd.f32 %v1401, %v1407
      %v1422 = vadd.f32 %v1402, %v1407
      %v1423 = vadd.f32 %v1403, %v1407
      %v1424 = vadd.f32 %v1404, %v1407
      %v1425 = vmax.f32 %v1409, 0.0
      %v1426 = vmax.f32 %v1410, 0.0
      %v1427 = vmax.f32 %v1411, 0.0
      %v1428 = vmax.f32 %v1412, 0.0
      %v1429 = vmax.f32 %v1413, 0.0
      %v1430 = vmax.f32 %v1414, 0.0
      %v1431 = vmax.f32 %v1415, 0.0
      %v1432 = vmax.f32 %v1416, 0.0
      %v1433 = vmax.f32 %v1417, 0.0
      %v1434 = vmax.f32 %v1418, 0.0
      %v1435 = vmax.f32 %v1419, 0.0
      %v1436 = vmax.f32 %v1420, 0.0
      %v1437 = vmax.f32 %v1421, 0.0
      %v1438 = vmax.f32 %v1422, 0.0
      %v1439 = vmax.f32 %v1423, 0.0
      %v1440 = vmax.f32 %v1424, 0.0
      %v1441 = vld [vmem:[%s7] sm:$0x1]
      %1442 = vset.pattern.permute.xlu0 2
      %1443 = vperm.xlu0 %1442, %v522
      %v1444 = vpop.permute.xlu0 %1443
      %1446 = vset.pattern.permute.xlu0 2
      %1447 = vperm.xlu0 %1446, %v523
      %v1448 = vpop.permute.xlu0 %1447
      %1450 = vset.pattern.permute.xlu0 2
      %1451 = vperm.xlu0 %1450, %v524
      %v1452 = vpop.permute.xlu0 %1451
      %1454 = vset.pattern.permute.xlu0 2
      %1455 = vperm.xlu0 %1454, %v525
      %v1456 = vpop.permute.xlu0 %1455
      %1458 = vset.pattern.permute.xlu0 2
      %1459 = vperm.xlu0 %1458, %v526
      %v1460 = vpop.permute.xlu0 %1459
      %1462 = vset.pattern.permute.xlu0 2
      %1463 = vperm.xlu0 %1462, %v527
      %v1464 = vpop.permute.xlu0 %1463
      %1466 = vset.pattern.permute.xlu0 2
      %1467 = vperm.xlu0 %1466, %v528
      %v1468 = vpop.permute.xlu0 %1467
      %1470 = vset.pattern.permute.xlu0 2
      %1471 = vperm.xlu0 %1470, %v529
      %v1472 = vpop.permute.xlu0 %1471
      %1474 = vset.pattern.permute.xlu0 2
      %1475 = vperm.xlu0 %1474, %v530
      %v1476 = vpop.permute.xlu0 %1475
      %1478 = vset.pattern.permute.xlu0 2
      %1479 = vperm.xlu0 %1478, %v531
      %v1480 = vpop.permute.xlu0 %1479
      %1482 = vset.pattern.permute.xlu0 2
      %1483 = vperm.xlu0 %1482, %v532
      %v1484 = vpop.permute.xlu0 %1483
      %1486 = vset.pattern.permute.xlu0 2
      %1487 = vperm.xlu0 %1486, %v533
      %v1488 = vpop.permute.xlu0 %1487
      %1490 = vset.pattern.permute.xlu0 2
      %1491 = vperm.xlu0 %1490, %v534
      %v1492 = vpop.permute.xlu0 %1491
      %1494 = vset.pattern.permute.xlu0 2
      %1495 = vperm.xlu0 %1494, %v535
      %v1496 = vpop.permute.xlu0 %1495
      %1498 = vset.pattern.permute.xlu0 2
      %1499 = vperm.xlu0 %1498, %v536
      %v1500 = vpop.permute.xlu0 %1499
      %1502 = vset.pattern.permute.xlu0 2
      %1503 = vperm.xlu0 %1502, %v537
      %v1504 = vpop.permute.xlu0 %1503
      %v1507 = vperm.slane %v1441, 0
      %v1509 = vmul.f32 %v1444, %v1507
      %v1510 = vmul.f32 %v1448, %v1507
      %v1511 = vmul.f32 %v1452, %v1507
      %v1512 = vmul.f32 %v1456, %v1507
      %v1513 = vmul.f32 %v1460, %v1507
      %v1514 = vmul.f32 %v1464, %v1507
      %v1515 = vmul.f32 %v1468, %v1507
      %v1516 = vmul.f32 %v1472, %v1507
      %v1517 = vmul.f32 %v1476, %v1507
      %v1518 = vmul.f32 %v1480, %v1507
      %v1519 = vmul.f32 %v1484, %v1507
      %v1520 = vmul.f32 %v1488, %v1507
      %v1521 = vmul.f32 %v1492, %v1507
      %v1522 = vmul.f32 %v1496, %v1507
      %v1523 = vmul.f32 %v1500, %v1507
      %v1524 = vmul.f32 %v1504, %v1507
      %v1525 = vld [vmem:[%s8] sm:$0x1]
      %v1527 = vperm.slane %v1525, 0
      %v1529 = vadd.f32 %v1509, %v1527
      %v1530 = vadd.f32 %v1510, %v1527
      %v1531 = vadd.f32 %v1511, %v1527
      %v1532 = vadd.f32 %v1512, %v1527
      %v1533 = vadd.f32 %v1513, %v1527
      %v1534 = vadd.f32 %v1514, %v1527
      %v1535 = vadd.f32 %v1515, %v1527
      %v1536 = vadd.f32 %v1516, %v1527
      %v1537 = vadd.f32 %v1517, %v1527
      %v1538 = vadd.f32 %v1518, %v1527
      %v1539 = vadd.f32 %v1519, %v1527
      %v1540 = vadd.f32 %v1520, %v1527
      %v1541 = vadd.f32 %v1521, %v1527
      %v1542 = vadd.f32 %v1522, %v1527
      %v1543 = vadd.f32 %v1523, %v1527
      %v1544 = vadd.f32 %v1524, %v1527
      %v1545 = vadd.f32 %v1425, %v1529
      %v1546 = vadd.f32 %v1426, %v1530
      %v1547 = vadd.f32 %v1427, %v1531
      %v1548 = vadd.f32 %v1428, %v1532
      %v1549 = vadd.f32 %v1429, %v1533
      %v1550 = vadd.f32 %v1430, %v1534
      %v1551 = vadd.f32 %v1431, %v1535
      %v1552 = vadd.f32 %v1432, %v1536
      %v1553 = vadd.f32 %v1433, %v1537
      %v1554 = vadd.f32 %v1434, %v1538
      %v1555 = vadd.f32 %v1435, %v1539
      %v1556 = vadd.f32 %v1436, %v1540
      %v1557 = vadd.f32 %v1437, %v1541
      %v1558 = vadd.f32 %v1438, %v1542
      %v1559 = vadd.f32 %v1439, %v1543
      %v1560 = vadd.f32 %v1440, %v1544
      %vm1577 = vcmask 1040384
      %v1578 = vrot.slane %v1545, 7
      %v1579 = vrot.slane %v1546, 7
      %v1580 = vsel %vm1577, %v1578, %v1579
      %v1581 = vrot.slane %v1547, 7
      %v1582 = vrot.slane %v1548, 7
      %v1583 = vsel %vm1577, %v1581, %v1582
      %v1584 = vrot.slane %v1549, 7
      %v1585 = vrot.slane %v1550, 7
      %v1586 = vsel %vm1577, %v1584, %v1585
      %v1587 = vrot.slane %v1551, 7
      %v1588 = vrot.slane %v1552, 7
      %v1589 = vsel %vm1577, %v1587, %v1588
      %v1590 = vrot.slane %v1553, 7
      %v1591 = vrot.slane %v1554, 7
      %v1592 = vsel %vm1577, %v1590, %v1591
      %v1593 = vrot.slane %v1555, 7
      %v1594 = vrot.slane %v1556, 7
      %v1595 = vsel %vm1577, %v1593, %v1594
      %v1596 = vrot.slane %v1557, 7
      %v1597 = vrot.slane %v1558, 7
      %v1598 = vsel %vm1577, %v1596, %v1597
      %v1599 = vrot.slane %v1559, 7
      %v1600 = vrot.slane %v1560, 7
      %v1601 = vsel %vm1577, %v1599, %v1600
      %v1626 = vsel %vm1577, 0.0, %v1578
      %v1627 = vsel %vm1577, 0.0, %v1581
      %v1628 = vsel %vm1577, 0.0, %v1584
      %v1629 = vsel %vm1577, 0.0, %v1587
      %v1630 = vsel %vm1577, 0.0, %v1590
      %v1631 = vsel %vm1577, 0.0, %v1593
      %v1632 = vsel %vm1577, 0.0, %v1596
      %v1633 = vsel %vm1577, 0.0, %v1599
      %v1634 = vsel %vm1577, %v1579, 0.0
      %v1635 = vsel %vm1577, %v1582, 0.0
      %v1636 = vsel %vm1577, %v1585, 0.0
      %v1637 = vsel %vm1577, %v1588, 0.0
      %v1638 = vsel %vm1577, %v1591, 0.0
      %v1639 = vsel %vm1577, %v1594, 0.0
      %v1640 = vsel %vm1577, %v1597, 0.0
      %v1641 = vsel %vm1577, %v1600, 0.0
      %v1658 = vrot.slane %v1626, 1
      %v1659 = vrot.slane %v1580, 1
      %v1660 = vsel %vm810, %v1658, %v1659
      %v1661 = vrot.slane %v1634, 1
      %v1662 = vsel %vm810, %v1659, %v1661
      %v1663 = vrot.slane %v1627, 1
      %v1664 = vrot.slane %v1583, 1
      %v1665 = vsel %vm810, %v1663, %v1664
      %v1666 = vrot.slane %v1635, 1
      %v1667 = vsel %vm810, %v1664, %v1666
      %v1668 = vrot.slane %v1628, 1
      %v1669 = vrot.slane %v1586, 1
      %v1670 = vsel %vm810, %v1668, %v1669
      %v1671 = vrot.slane %v1636, 1
      %v1672 = vsel %vm810, %v1669, %v1671
      %v1673 = vrot.slane %v1629, 1
      %v1674 = vrot.slane %v1589, 1
      %v1675 = vsel %vm810, %v1673, %v1674
      %v1676 = vrot.slane %v1637, 1
      %v1677 = vsel %vm810, %v1674, %v1676
      %v1678 = vrot.slane %v1630, 1
      %v1679 = vrot.slane %v1592, 1
      %v1680 = vsel %vm810, %v1678, %v1679
      %v1681 = vrot.slane %v1638, 1
      %v1682 = vsel %vm810, %v1679, %v1681
      %v1683 = vrot.slane %v1631, 1
      %v1684 = vrot.slane %v1595, 1
      %v1685 = vsel %vm810, %v1683, %v1684
      %v1686 = vrot.slane %v1639, 1
      %v1687 = vsel %vm810, %v1684, %v1686
      %v1688 = vrot.slane %v1632, 1
      %v1689 = vrot.slane %v1598, 1
      %v1690 = vsel %vm810, %v1688, %v1689
      %v1691 = vrot.slane %v1640, 1
      %v1692 = vsel %vm810, %v1689, %v1691
      %v1693 = vrot.slane %v1633, 1
      %v1694 = vrot.slane %v1601, 1
      %v1695 = vsel %vm810, %v1693, %v1694
      %v1696 = vrot.slane %v1641, 1
      %v1697 = vsel %vm810, %v1694, %v1696
      %v1714 = vrot.slane %v1626, 2
      %v1715 = vrot.slane %v1580, 2
      %v1716 = vsel %vm899, %v1714, %v1715
      %v1717 = vrot.slane %v1634, 2
      %v1718 = vsel %vm899, %v1715, %v1717
      %v1719 = vrot.slane %v1627, 2
      %v1720 = vrot.slane %v1583, 2
      %v1721 = vsel %vm899, %v1719, %v1720
      %v1722 = vrot.slane %v1635, 2
      %v1723 = vsel %vm899, %v1720, %v1722
      %v1724 = vrot.slane %v1628, 2
      %v1725 = vrot.slane %v1586, 2
      %v1726 = vsel %vm899, %v1724, %v1725
      %v1727 = vrot.slane %v1636, 2
      %v1728 = vsel %vm899, %v1725, %v1727
      %v1729 = vrot.slane %v1629, 2
      %v1730 = vrot.slane %v1589, 2
      %v1731 = vsel %vm899, %v1729, %v1730
      %v1732 = vrot.slane %v1637, 2
      %v1733 = vsel %vm899, %v1730, %v1732
      %v1734 = vrot.slane %v1630, 2
      %v1735 = vrot.slane %v1592, 2
      %v1736 = vsel %vm899, %v1734, %v1735
      %v1737 = vrot.slane %v1638, 2
      %v1738 = vsel %vm899, %v1735, %v1737
      %v1739 = vrot.slane %v1631, 2
      %v1740 = vrot.slane %v1595, 2
      %v1741 = vsel %vm899, %v1739, %v1740
      %v1742 = vrot.slane %v1639, 2
      %v1743 = vsel %vm899, %v1740, %v1742
      %v1744 = vrot.slane %v1632, 2
      %v1745 = vrot.slane %v1598, 2
      %v1746 = vsel %vm899, %v1744, %v1745
      %v1747 = vrot.slane %v1640, 2
      %v1748 = vsel %vm899, %v1745, %v1747
      %v1749 = vrot.slane %v1633, 2
      %v1750 = vrot.slane %v1601, 2
      %v1751 = vsel %vm899, %v1749, %v1750
      %v1752 = vrot.slane %v1641, 2
      %v1753 = vsel %vm899, %v1750, %v1752
      %v1770 = vld [vmem:[%s9] sm:$0xff]
      %v1771 = vld [vmem:[%s9 + $0x8] sm:$0xff]
      %v1772 = vld [vmem:[%s9 + $0x10] sm:$0xff]
      %v1773 = vld [vmem:[%s9 + $0x18] sm:$0xff]
      %v1774 = vld [vmem:[%s9 + $0x20] sm:$0xff]
      %v1775 = vld [vmem:[%s9 + $0x28] sm:$0xff]
      %v1776 = vld [vmem:[%s9 + $0x30] sm:$0xff]
      %v1777 = vld [vmem:[%s9 + $0x38] sm:$0xff]
      %v1778 = vld [vmem:[%s9 + $0x40] sm:$0xff]
      %v1779 = vld [vmem:[%s9 + $0x48] sm:$0xff]
      %v1780 = vld [vmem:[%s9 + $0x50] sm:$0xff]
      %v1781 = vld [vmem:[%s9 + $0x58] sm:$0xff]
      %v1782 = vld [vmem:[%s9 + $0x60] sm:$0xff]
      %v1783 = vld [vmem:[%s9 + $0x68] sm:$0xff]
      %v1784 = vld [vmem:[%s9 + $0x70] sm:$0xff]
      %v1785 = vld [vmem:[%s9 + $0x78] sm:$0xff]
      %v1786 = vld [vmem:[%s9 + $0x80] sm:$0xff]
      %v1787 = vld [vmem:[%s9 + $0x88] sm:$0xff]
      %v1788 = vld [vmem:[%s9 + $0x90] sm:$0xff]
      %v1789 = vld [vmem:[%s9 + $0x98] sm:$0xff]
      %v1790 = vld [vmem:[%s9 + $0xa0] sm:$0xff]
      %v1791 = vld [vmem:[%s9 + $0xa8] sm:$0xff]
      %v1792 = vld [vmem:[%s9 + $0xb0] sm:$0xff]
      %v1793 = vld [vmem:[%s9 + $0xb8] sm:$0xff]
      %v1794 = vld [vmem:[%s9 + $0xc0] sm:$0xff]
      %v1795 = vld [vmem:[%s9 + $0xc8] sm:$0xff]
      %v1796 = vld [vmem:[%s9 + $0xd0] sm:$0xff]
      %v1797 = vld [vmem:[%s9 + $0xd8] sm:$0xff]
      %v1798 = vld [vmem:[%s9 + $0xe0] sm:$0xff]
      %v1799 = vld [vmem:[%s9 + $0xe8] sm:$0xff]
      %v1800 = vld [vmem:[%s9 + $0xf0] sm:$0xff]
      %v1801 = vld [vmem:[%s9 + $0xf8] sm:$0xff]
      %v1802 = vld [vmem:[%s9 + $0x100] sm:$0xff]
      %v1803 = vld [vmem:[%s9 + $0x108] sm:$0xff]
      %v1804 = vld [vmem:[%s9 + $0x110] sm:$0xff]
      %v1805 = vld [vmem:[%s9 + $0x118] sm:$0xff]
      %v1806 = vld [vmem:[%s9 + $0x120] sm:$0xff]
      %v1807 = vld [vmem:[%s9 + $0x128] sm:$0xff]
      %v1808 = vld [vmem:[%s9 + $0x130] sm:$0xff]
      %v1809 = vld [vmem:[%s9 + $0x138] sm:$0xff]
      %v1810 = vld [vmem:[%s9 + $0x140] sm:$0xff]
      %v1811 = vld [vmem:[%s9 + $0x148] sm:$0xff]
      %v1812 = vld [vmem:[%s9 + $0x150] sm:$0xff]
      %v1813 = vld [vmem:[%s9 + $0x158] sm:$0xff]
      %v1814 = vld [vmem:[%s9 + $0x160] sm:$0xff]
      %v1815 = vld [vmem:[%s9 + $0x168] sm:$0xff]
      %v1816 = vld [vmem:[%s9 + $0x170] sm:$0xff]
      %v1817 = vld [vmem:[%s9 + $0x178] sm:$0xff]
      %1818 = vmatpush.msra.mxu0 %v1785
      %1819 = vmatpush.msra.mxu0 %v1784
      %1820 = vmatpush.msra.mxu0 %v1783
      %1821 = vmatpush.msra.mxu0 %v1782
      %1822 = vmatpush.msra.mxu0 %v1781
      %1823 = vmatpush.msra.mxu0 %v1780
      %1824 = vmatpush.msra.mxu0 %v1779
      %1825 = vmatpush.msra.mxu0 %v1778
      %1826 = vmatpush.msra.mxu0 %v1777
      %1827 = vmatpush.msra.mxu0 %v1776
      %1828 = vmatpush.msra.mxu0 %v1775
      %1829 = vmatpush.msra.mxu0 %v1774
      %1830 = vmatpush.msra.mxu0 %v1773
      %1831 = vmatpush.msra.mxu0 %v1772
      %1832 = vmatpush.msra.mxu0 %v1771
      %1833 = vmatpush.msra.mxu0 %v1770
      %1834 = vmatmul.f32.gmra.mxu0 %v1626
      %v1835 = vpop.f32.mrf.mxu0
      %v1836 = vadd.f32 0.0, %v1835
      %1837 = vmatmul.f32.gmra.mxu0 %v1580
      %v1838 = vpop.f32.mrf.mxu0
      %v1839 = vadd.f32 0.0, %v1838
      %1840 = vmatmul.f32.gmra.mxu0 %v1627
      %v1841 = vpop.f32.mrf.mxu0
      %v1842 = vadd.f32 0.0, %v1841
      %1843 = vmatmul.f32.gmra.mxu0 %v1583
      %v1844 = vpop.f32.mrf.mxu0
      %v1845 = vadd.f32 0.0, %v1844
      %1846 = vmatmul.f32.gmra.mxu0 %v1628
      %v1847 = vpop.f32.mrf.mxu0
      %v1848 = vadd.f32 0.0, %v1847
      %1849 = vmatmul.f32.gmra.mxu0 %v1586
      %v1850 = vpop.f32.mrf.mxu0
      %v1851 = vadd.f32 0.0, %v1850
      %1852 = vmatmul.f32.gmra.mxu0 %v1629
      %v1853 = vpop.f32.mrf.mxu0
      %v1854 = vadd.f32 0.0, %v1853
      %1855 = vmatmul.f32.gmra.mxu0 %v1589
      %v1856 = vpop.f32.mrf.mxu0
      %v1857 = vadd.f32 0.0, %v1856
      %1858 = vmatmul.f32.gmra.mxu0 %v1630
      %v1859 = vpop.f32.mrf.mxu0
      %v1860 = vadd.f32 0.0, %v1859
      %1861 = vmatmul.f32.gmra.mxu0 %v1592
      %v1862 = vpop.f32.mrf.mxu0
      %v1863 = vadd.f32 0.0, %v1862
      %1864 = vmatmul.f32.gmra.mxu0 %v1631
      %v1865 = vpop.f32.mrf.mxu0
      %v1866 = vadd.f32 0.0, %v1865
      %1867 = vmatmul.f32.gmra.mxu0 %v1595
      %v1868 = vpop.f32.mrf.mxu0
      %v1869 = vadd.f32 0.0, %v1868
      %1870 = vmatmul.f32.gmra.mxu0 %v1632
      %v1871 = vpop.f32.mrf.mxu0
      %v1872 = vadd.f32 0.0, %v1871
      %1873 = vmatmul.f32.gmra.mxu0 %v1598
      %v1874 = vpop.f32.mrf.mxu0
      %v1875 = vadd.f32 0.0, %v1874
      %1876 = vmatmul.f32.gmra.mxu0 %v1633
      %v1877 = vpop.f32.mrf.mxu0
      %v1878 = vadd.f32 0.0, %v1877
      %1879 = vmatmul.f32.gmra.mxu0 %v1601
      %v1880 = vpop.f32.mrf.mxu0
      %v1881 = vadd.f32 0.0, %v1880
      %1882 = vdwg.mxu0
      %1883 = vmatpush.msra.mxu0 %v1801
      %1884 = vmatpush.msra.mxu0 %v1800
      %1885 = vmatpush.msra.mxu0 %v1799
      %1886 = vmatpush.msra.mxu0 %v1798
      %1887 = vmatpush.msra.mxu0 %v1797
      %1888 = vmatpush.msra.mxu0 %v1796
      %1889 = vmatpush.msra.mxu0 %v1795
      %1890 = vmatpush.msra.mxu0 %v1794
      %1891 = vmatpush.msra.mxu0 %v1793
      %1892 = vmatpush.msra.mxu0 %v1792
      %1893 = vmatpush.msra.mxu0 %v1791
      %1894 = vmatpush.msra.mxu0 %v1790
      %1895 = vmatpush.msra.mxu0 %v1789
      %1896 = vmatpush.msra.mxu0 %v1788
      %1897 = vmatpush.msra.mxu0 %v1787
      %1898 = vmatpush.msra.mxu0 %v1786
      %1899 = vmatmul.f32.gmra.mxu0 %v1660
      %v1900 = vpop.f32.mrf.mxu0
      %v1901 = vadd.f32 %v1836, %v1900
      %1902 = vmatmul.f32.gmra.mxu0 %v1662
      %v1903 = vpop.f32.mrf.mxu0
      %v1904 = vadd.f32 %v1839, %v1903
      %1905 = vmatmul.f32.gmra.mxu0 %v1665
      %v1906 = vpop.f32.mrf.mxu0
      %v1907 = vadd.f32 %v1842, %v1906
      %1908 = vmatmul.f32.gmra.mxu0 %v1667
      %v1909 = vpop.f32.mrf.mxu0
      %v1910 = vadd.f32 %v1845, %v1909
      %1911 = vmatmul.f32.gmra.mxu0 %v1670
      %v1912 = vpop.f32.mrf.mxu0
      %v1913 = vadd.f32 %v1848, %v1912
      %1914 = vmatmul.f32.gmra.mxu0 %v1672
      %v1915 = vpop.f32.mrf.mxu0
      %v1916 = vadd.f32 %v1851, %v1915
      %1917 = vmatmul.f32.gmra.mxu0 %v1675
      %v1918 = vpop.f32.mrf.mxu0
      %v1919 = vadd.f32 %v1854, %v1918
      %1920 = vmatmul.f32.gmra.mxu0 %v1677
      %v1921 = vpop.f32.mrf.mxu0
      %v1922 = vadd.f32 %v1857, %v1921
      %1923 = vmatmul.f32.gmra.mxu0 %v1680
      %v1924 = vpop.f32.mrf.mxu0
      %v1925 = vadd.f32 %v1860, %v1924
      %1926 = vmatmul.f32.gmra.mxu0 %v1682
      %v1927 = vpop.f32.mrf.mxu0
      %v1928 = vadd.f32 %v1863, %v1927
      %1929 = vmatmul.f32.gmra.mxu0 %v1685
      %v1930 = vpop.f32.mrf.mxu0
      %v1931 = vadd.f32 %v1866, %v1930
      %1932 = vmatmul.f32.gmra.mxu0 %v1687
      %v1933 = vpop.f32.mrf.mxu0
      %v1934 = vadd.f32 %v1869, %v1933
      %1935 = vmatmul.f32.gmra.mxu0 %v1690
      %v1936 = vpop.f32.mrf.mxu0
      %v1937 = vadd.f32 %v1872, %v1936
      %1938 = vmatmul.f32.gmra.mxu0 %v1692
      %v1939 = vpop.f32.mrf.mxu0
      %v1940 = vadd.f32 %v1875, %v1939
      %1941 = vmatmul.f32.gmra.mxu0 %v1695
      %v1942 = vpop.f32.mrf.mxu0
      %v1943 = vadd.f32 %v1878, %v1942
      %1944 = vmatmul.f32.gmra.mxu0 %v1697
      %v1945 = vpop.f32.mrf.mxu0
      %v1946 = vadd.f32 %v1881, %v1945
      %1947 = vdwg.mxu0
      %1948 = vmatpush.msra.mxu0 %v1817
      %1949 = vmatpush.msra.mxu0 %v1816
      %1950 = vmatpush.msra.mxu0 %v1815
      %1951 = vmatpush.msra.mxu0 %v1814
      %1952 = vmatpush.msra.mxu0 %v1813
      %1953 = vmatpush.msra.mxu0 %v1812
      %1954 = vmatpush.msra.mxu0 %v1811
      %1955 = vmatpush.msra.mxu0 %v1810
      %1956 = vmatpush.msra.mxu0 %v1809
      %1957 = vmatpush.msra.mxu0 %v1808
      %1958 = vmatpush.msra.mxu0 %v1807
      %1959 = vmatpush.msra.mxu0 %v1806
      %1960 = vmatpush.msra.mxu0 %v1805
      %1961 = vmatpush.msra.mxu0 %v1804
      %1962 = vmatpush.msra.mxu0 %v1803
      %1963 = vmatpush.msra.mxu0 %v1802
      %1964 = vmatmul.f32.gmra.mxu0 %v1716
      %v1965 = vpop.f32.mrf.mxu0
      %v1966 = vadd.f32 %v1901, %v1965
      %1967 = vmatmul.f32.gmra.mxu0 %v1718
      %v1968 = vpop.f32.mrf.mxu0
      %v1969 = vadd.f32 %v1904, %v1968
      %1970 = vmatmul.f32.gmra.mxu0 %v1721
      %v1971 = vpop.f32.mrf.mxu0
      %v1972 = vadd.f32 %v1907, %v1971
      %1973 = vmatmul.f32.gmra.mxu0 %v1723
      %v1974 = vpop.f32.mrf.mxu0
      %v1975 = vadd.f32 %v1910, %v1974
      %1976 = vmatmul.f32.gmra.mxu0 %v1726
      %v1977 = vpop.f32.mrf.mxu0
      %v1978 = vadd.f32 %v1913, %v1977
      %1979 = vmatmul.f32.gmra.mxu0 %v1728
      %v1980 = vpop.f32.mrf.mxu0
      %v1981 = vadd.f32 %v1916, %v1980
      %1982 = vmatmul.f32.gmra.mxu0 %v1731
      %v1983 = vpop.f32.mrf.mxu0
      %v1984 = vadd.f32 %v1919, %v1983
      %1985 = vmatmul.f32.gmra.mxu0 %v1733
      %v1986 = vpop.f32.mrf.mxu0
      %v1987 = vadd.f32 %v1922, %v1986
      %1988 = vmatmul.f32.gmra.mxu0 %v1736
      %v1989 = vpop.f32.mrf.mxu0
      %v1990 = vadd.f32 %v1925, %v1989
      %1991 = vmatmul.f32.gmra.mxu0 %v1738
      %v1992 = vpop.f32.mrf.mxu0
      %v1993 = vadd.f32 %v1928, %v1992
      %1994 = vmatmul.f32.gmra.mxu0 %v1741
      %v1995 = vpop.f32.mrf.mxu0
      %v1996 = vadd.f32 %v1931, %v1995
      %1997 = vmatmul.f32.gmra.mxu0 %v1743
      %v1998 = vpop.f32.mrf.mxu0
      %v1999 = vadd.f32 %v1934, %v1998
      %2000 = vmatmul.f32.gmra.mxu0 %v1746
      %v2001 = vpop.f32.mrf.mxu0
      %v2002 = vadd.f32 %v1937, %v2001
      %2003 = vmatmul.f32.gmra.mxu0 %v1748
      %v2004 = vpop.f32.mrf.mxu0
      %v2005 = vadd.f32 %v1940, %v2004
      %2006 = vmatmul.f32.gmra.mxu0 %v1751
      %v2007 = vpop.f32.mrf.mxu0
      %v2008 = vadd.f32 %v1943, %v2007
      %2009 = vmatmul.f32.gmra.mxu0 %v1753
      %v2010 = vpop.f32.mrf.mxu0
      %v2011 = vadd.f32 %v1946, %v2010
      %2012 = vdwg.mxu0
      %v2013 = vld [vmem:[%s10] sm:$0x1]
      %v2015 = vperm.slane %v2013, 0
      %v2017 = vmul.f32 %v1966, %v2015
      %v2018 = vmul.f32 %v1969, %v2015
      %v2019 = vmul.f32 %v1972, %v2015
      %v2020 = vmul.f32 %v1975, %v2015
      %v2021 = vmul.f32 %v1978, %v2015
      %v2022 = vmul.f32 %v1981, %v2015
      %v2023 = vmul.f32 %v1984, %v2015
      %v2024 = vmul.f32 %v1987, %v2015
      %v2025 = vmul.f32 %v1990, %v2015
      %v2026 = vmul.f32 %v1993, %v2015
      %v2027 = vmul.f32 %v1996, %v2015
      %v2028 = vmul.f32 %v1999, %v2015
      %v2029 = vmul.f32 %v2002, %v2015
      %v2030 = vmul.f32 %v2005, %v2015
      %v2031 = vmul.f32 %v2008, %v2015
      %v2032 = vmul.f32 %v2011, %v2015
      %v2033 = vld [vmem:[%s11] sm:$0x1]
      %v2035 = vperm.slane %v2033, 0
      %v2037 = vadd.f32 %v2017, %v2035
      %v2038 = vadd.f32 %v2018, %v2035
      %v2039 = vadd.f32 %v2019, %v2035
      %v2040 = vadd.f32 %v2020, %v2035
      %v2041 = vadd.f32 %v2021, %v2035
      %v2042 = vadd.f32 %v2022, %v2035
      %v2043 = vadd.f32 %v2023, %v2035
      %v2044 = vadd.f32 %v2024, %v2035
      %v2045 = vadd.f32 %v2025, %v2035
      %v2046 = vadd.f32 %v2026, %v2035
      %v2047 = vadd.f32 %v2027, %v2035
      %v2048 = vadd.f32 %v2028, %v2035
      %v2049 = vadd.f32 %v2029, %v2035
      %v2050 = vadd.f32 %v2030, %v2035
      %v2051 = vadd.f32 %v2031, %v2035
      %v2052 = vadd.f32 %v2032, %v2035
      %v2053 = vmax.f32 %v2037, 0.0
      %v2054 = vmax.f32 %v2038, 0.0
      %v2055 = vmax.f32 %v2039, 0.0
      %v2056 = vmax.f32 %v2040, 0.0
      %v2057 = vmax.f32 %v2041, 0.0
      %v2058 = vmax.f32 %v2042, 0.0
      %v2059 = vmax.f32 %v2043, 0.0
      %v2060 = vmax.f32 %v2044, 0.0
      %v2061 = vmax.f32 %v2045, 0.0
      %v2062 = vmax.f32 %v2046, 0.0
      %v2063 = vmax.f32 %v2047, 0.0
      %v2064 = vmax.f32 %v2048, 0.0
      %v2065 = vmax.f32 %v2049, 0.0
      %v2066 = vmax.f32 %v2050, 0.0
      %v2067 = vmax.f32 %v2051, 0.0
      %v2068 = vmax.f32 %v2052, 0.0
      %v2069 = vld [vmem:[%s12] sm:$0xff]
      %v2070 = vld [vmem:[%s12 + $0x8] sm:$0xff]
      %v2071 = vld [vmem:[%s12 + $0x10] sm:$0xff]
      %v2072 = vld [vmem:[%s12 + $0x18] sm:$0xff]
      %v2073 = vld [vmem:[%s12 + $0x20] sm:$0xff]
      %v2074 = vld [vmem:[%s12 + $0x28] sm:$0xff]
      %v2075 = vld [vmem:[%s12 + $0x30] sm:$0xff]
      %v2076 = vld [vmem:[%s12 + $0x38] sm:$0xff]
      %v2077 = vld [vmem:[%s12 + $0x40] sm:$0xff]
      %v2078 = vld [vmem:[%s12 + $0x48] sm:$0xff]
      %v2079 = vld [vmem:[%s12 + $0x50] sm:$0xff]
      %v2080 = vld [vmem:[%s12 + $0x58] sm:$0xff]
      %v2081 = vld [vmem:[%s12 + $0x60] sm:$0xff]
      %v2082 = vld [vmem:[%s12 + $0x68] sm:$0xff]
      %v2083 = vld [vmem:[%s12 + $0x70] sm:$0xff]
      %v2084 = vld [vmem:[%s12 + $0x78] sm:$0xff]
      %v2085 = vmul.f32 %v2053, %v2069
      %v2086 = vmul.f32 %v2054, %v2070
      %v2087 = vmul.f32 %v2055, %v2071
      %v2088 = vmul.f32 %v2056, %v2072
      %v2089 = vmul.f32 %v2057, %v2073
      %v2090 = vmul.f32 %v2058, %v2074
      %v2091 = vmul.f32 %v2059, %v2075
      %v2092 = vmul.f32 %v2060, %v2076
      %v2093 = vmul.f32 %v2061, %v2077
      %v2094 = vmul.f32 %v2062, %v2078
      %v2095 = vmul.f32 %v2063, %v2079
      %v2096 = vmul.f32 %v2064, %v2080
      %v2097 = vmul.f32 %v2065, %v2081
      %v2098 = vmul.f32 %v2066, %v2082
      %v2099 = vmul.f32 %v2067, %v2083
      %v2100 = vmul.f32 %v2068, %v2084
      %v2101 = vld [vmem:[%s14] sm:$0xff]
      %v2102 = vld [vmem:[%s14 + $0x8] sm:$0xff]
      %v2103 = vld [vmem:[%s14 + $0x10] sm:$0xff]
      %v2104 = vld [vmem:[%s14 + $0x18] sm:$0xff]
      %v2105 = vld [vmem:[%s14 + $0x20] sm:$0xff]
      %v2106 = vld [vmem:[%s14 + $0x28] sm:$0xff]
      %v2107 = vld [vmem:[%s14 + $0x30] sm:$0xff]
      %v2108 = vld [vmem:[%s14 + $0x38] sm:$0xff]
      %v2109 = vld [vmem:[%s14 + $0x40] sm:$0xff]
      %v2110 = vld [vmem:[%s14 + $0x48] sm:$0xff]
      %v2111 = vld [vmem:[%s14 + $0x50] sm:$0xff]
      %v2112 = vld [vmem:[%s14 + $0x58] sm:$0xff]
      %v2113 = vld [vmem:[%s14 + $0x60] sm:$0xff]
      %v2114 = vld [vmem:[%s14 + $0x68] sm:$0xff]
      %v2115 = vld [vmem:[%s14 + $0x70] sm:$0xff]
      %v2116 = vld [vmem:[%s14 + $0x78] sm:$0xff]
      %2117 = vmatpush.msra.mxu0 %v2116
      %2118 = vmatpush.msra.mxu0 %v2115
      %2119 = vmatpush.msra.mxu0 %v2114
      %2120 = vmatpush.msra.mxu0 %v2113
      %2121 = vmatpush.msra.mxu0 %v2112
      %2122 = vmatpush.msra.mxu0 %v2111
      %2123 = vmatpush.msra.mxu0 %v2110
      %2124 = vmatpush.msra.mxu0 %v2109
      %2125 = vmatpush.msra.mxu0 %v2108
      %2126 = vmatpush.msra.mxu0 %v2107
      %2127 = vmatpush.msra.mxu0 %v2106
      %2128 = vmatpush.msra.mxu0 %v2105
      %2129 = vmatpush.msra.mxu0 %v2104
      %2130 = vmatpush.msra.mxu0 %v2103
      %2131 = vmatpush.msra.mxu0 %v2102
      %2132 = vmatpush.msra.mxu0 %v2101
      %2133 = vmatmul.f32.gmra.mxu0 %v2085
      %v2134 = vpop.f32.mrf.mxu0
      %v2135 = vadd.f32 0.0, %v2134
      %2136 = vmatmul.f32.gmra.mxu0 %v2086
      %v2137 = vpop.f32.mrf.mxu0
      %v2138 = vadd.f32 0.0, %v2137
      %2139 = vmatmul.f32.gmra.mxu0 %v2087
      %v2140 = vpop.f32.mrf.mxu0
      %v2141 = vadd.f32 0.0, %v2140
      %2142 = vmatmul.f32.gmra.mxu0 %v2088
      %v2143 = vpop.f32.mrf.mxu0
      %v2144 = vadd.f32 0.0, %v2143
      %2145 = vmatmul.f32.gmra.mxu0 %v2089
      %v2146 = vpop.f32.mrf.mxu0
      %v2147 = vadd.f32 0.0, %v2146
      %2148 = vmatmul.f32.gmra.mxu0 %v2090
      %v2149 = vpop.f32.mrf.mxu0
      %v2150 = vadd.f32 0.0, %v2149
      %2151 = vmatmul.f32.gmra.mxu0 %v2091
      %v2152 = vpop.f32.mrf.mxu0
      %v2153 = vadd.f32 0.0, %v2152
      %2154 = vmatmul.f32.gmra.mxu0 %v2092
      %v2155 = vpop.f32.mrf.mxu0
      %v2156 = vadd.f32 0.0, %v2155
      %2157 = vmatmul.f32.gmra.mxu0 %v2093
      %v2158 = vpop.f32.mrf.mxu0
      %v2159 = vadd.f32 0.0, %v2158
      %2160 = vmatmul.f32.gmra.mxu0 %v2094
      %v2161 = vpop.f32.mrf.mxu0
      %v2162 = vadd.f32 0.0, %v2161
      %2163 = vmatmul.f32.gmra.mxu0 %v2095
      %v2164 = vpop.f32.mrf.mxu0
      %v2165 = vadd.f32 0.0, %v2164
      %2166 = vmatmul.f32.gmra.mxu0 %v2096
      %v2167 = vpop.f32.mrf.mxu0
      %v2168 = vadd.f32 0.0, %v2167
      %2169 = vmatmul.f32.gmra.mxu0 %v2097
      %v2170 = vpop.f32.mrf.mxu0
      %v2171 = vadd.f32 0.0, %v2170
      %2172 = vmatmul.f32.gmra.mxu0 %v2098
      %v2173 = vpop.f32.mrf.mxu0
      %v2174 = vadd.f32 0.0, %v2173
      %2175 = vmatmul.f32.gmra.mxu0 %v2099
      %v2176 = vpop.f32.mrf.mxu0
      %v2177 = vadd.f32 0.0, %v2176
      %2178 = vmatmul.f32.gmra.mxu0 %v2100
      %v2179 = vpop.f32.mrf.mxu0
      %v2180 = vadd.f32 0.0, %v2179
      %2181 = vdwg.mxu0
      %v2182 = vld [vmem:[%s13] sm:$0xff]
      %v2183 = vld [vmem:[%s15] sm:$0x1]
      %v2185 = vperm.slane %v2183, 0
      %2187 = vmatpush.msra.mxu0 %v2180
      %2188 = vmatpush.msra.mxu0 %v2177
      %2189 = vmatpush.msra.mxu0 %v2174
      %2190 = vmatpush.msra.mxu0 %v2171
      %2191 = vmatpush.msra.mxu0 %v2168
      %2192 = vmatpush.msra.mxu0 %v2165
      %2193 = vmatpush.msra.mxu0 %v2162
      %2194 = vmatpush.msra.mxu0 %v2159
      %2195 = vmatpush.msra.mxu0 %v2156
      %2196 = vmatpush.msra.mxu0 %v2153
      %2197 = vmatpush.msra.mxu0 %v2150
      %2198 = vmatpush.msra.mxu0 %v2147
      %2199 = vmatpush.msra.mxu0 %v2144
      %2200 = vmatpush.msra.mxu0 %v2141
      %2201 = vmatpush.msra.mxu0 %v2138
      %2202 = vmatpush.msra.mxu0 %v2135
      %2203 = vmatmul.f32.gmra.mxu0 %v2182
      %v2204 = vpop.f32.mrf.mxu0
      %v2205 = vadd.f32 %v2185, %v2204
      %2206 = vdwg.mxu0
      %vm2207 = vcmask 261120
      %2208 = vst.msk [vmem:[%s521] sm:$0xff] %vm2207, %v2205
      %p2209 = scmp.lt.s32.totalorder %s27, 1
      %s2210 = scalar_select %p2209, %s27, 1
      %s2211 = smul.addr %s2210, 8
      %s2212 = scalar_lea.vmem %s16, %s2211
      // Predicated region
      $region85: #{residual_cnn_encoder.1} parent=83 // pred_check
        %p2213 = pneg %p386
      $region86: #{residual_cnn_encoder.1} parent=83 // pred_check_branch
        %2215 = sbr.rel (%p2213) target = $region88
      $region87: #{residual_cnn_encoder.1} parent=83 // pred_region
        _
      $region88: #{residual_cnn_encoder.1} parent=83 // pred_fallthru
        _
    $region84: #{residual_cnn_encoder.1} parent=5 // pred_fallthru
      _
    %p2216 = scmp.le.s32.totalorder 2, %s22
    // Predicated region
    $region89: #{residual_cnn_encoder.1} parent=5 // pred_check
      %p2217 = pneg %p2216
    $region90: #{residual_cnn_encoder.1} parent=5 // pred_check_branch
      %2219 = sbr.rel (%p2217) target = $region92
    $region91: #{residual_cnn_encoder.1} parent=5 // pred_region
      %s2220 = ssub.s32 %s22, 2
      // Predicated region
      $region93: #{residual_cnn_encoder.1} parent=91 // pred_check
        %p2221 = pneg %p392
      $region94: #{residual_cnn_encoder.1} parent=91 // pred_check_branch
        %2223 = sbr.rel (%p2221) target = $region96
      $region95: #{residual_cnn_encoder.1} parent=91 // pred_region
        %p2224 = scmp.lt.s32.totalorder %s28, 1
        %s2225 = scalar_select %p2224, %s28, 1
        %s2226 = smul.addr %s2225, 8
        %s2227 = scalar_lea.vmem %s16, %s2226
      $region96: #{residual_cnn_encoder.1} parent=91 // pred_fallthru
        _
    $region92: #{residual_cnn_encoder.1} parent=5 // pred_fallthru
      _
  $region6: #{residual_cnn_encoder.1} parent=0 // loop_footer
    %s26 = sadd.s32 1, %s22
  $region7: #{residual_cnn_encoder.1} parent=0 // loop_footer_branch
    %21 = sbr.rel target = $region3
  $region8: #{residual_cnn_encoder.1} parent=0 // loop_exit
    _

</llo_original>
